<compile_context>
chip_gen: v7x
topology: tpu7x:2x2x1
jax: 0.10.0
libtpu: 0.0.40
codegen_flags: <defaults>
</compile_context>

<pallas_src>
import math
import functools

import jax
import jax.numpy as jnp
from jax import lax
from jax.experimental import pallas as pl
from jax.experimental.pallas import tpu as pltpu


# ---------------------------------------------------------------------------
# Helpers
# ---------------------------------------------------------------------------

def _round_up(x, m):
    return (x + m - 1) // m * m


def _pick_tile(dim, preferred, align):
    """Balanced tile <= preferred, multiple of `align`; caller pads dim to a multiple."""
    preferred = max(align, _round_up(preferred, align))
    nblk = -(-dim // preferred)
    return _round_up(-(-dim // nblk), align)


def _vmem_limit_bytes():
    """Generation-aware scoped-VMEM cap (v7x has 64 MiB/TC, v5e/v6e have 128 MiB)."""
    try:
        cap = pltpu.get_tpu_info().vmem_capacity_bytes
    except Exception:
        cap = 64 * 1024 * 1024  # conservative (v7x-sized) fallback
    return int(max(32 * 1024 * 1024, min(cap - 16 * 1024 * 1024, 96 * 1024 * 1024)))


# ---------------------------------------------------------------------------
# Tiled linear:  y = x @ W.T   with W in PyTorch (out_features, in_features) layout
# ---------------------------------------------------------------------------

def _linear_kernel(x_ref, w_ref, o_ref, acc_ref):
    @pl.when(pl.program_id(2) == 0)
    def _():
        acc_ref[...] = jnp.zeros_like(acc_ref)

    # x: (tm, tk), w: (tn, tk) -> contract over the last dim of both; the MXU consumes
    # the NT form directly (no per-step XLU transpose of the weight tile).
    acc_ref[...] += lax.dot_general(
        x_ref[...], w_ref[...],
        dimension_numbers=(((1,), (1,)), ((), ())),
        preferred_element_type=jnp.float32)

    @pl.when(pl.program_id(2) == pl.num_programs(2) - 1)
    def _():
        o_ref[...] = acc_ref[...].astype(o_ref.dtype)


def pallas_linear(x2d, weight, *, tm=512, tn=512, tk=1024):
    """y = x2d @ weight.T ; weight is (out_features, in_features) (PyTorch layout)."""
    M, K = x2d.shape
    N, K2 = weight.shape
    assert K == K2
    tm = _pick_tile(M, tm, 8)
    tn = _pick_tile(N, tn, 128)
    tk = _pick_tile(K, tk, 128)
    Mp, Np, Kp = _round_up(M, tm), _round_up(N, tn), _round_up(K, tk)
    xp = x2d if (Mp == M and Kp == K) else jnp.pad(x2d, ((0, Mp - M), (0, Kp - K)))
    wp = weight if (Np == N and Kp == K) else jnp.pad(weight, ((0, Np - N), (0, Kp - K)))

    out = pl.pallas_call(
        _linear_kernel,
        out_shape=jax.ShapeDtypeStruct((Mp, Np), x2d.dtype),
        grid_spec=pltpu.PrefetchScalarGridSpec(
            num_scalar_prefetch=0,
            grid=(Mp // tm, Np // tn, Kp // tk),
            in_specs=[
                pl.BlockSpec((tm, tk), lambda i, j, k: (i, k)),
                pl.BlockSpec((tn, tk), lambda i, j, k: (j, k)),
            ],
            out_specs=pl.BlockSpec((tm, tn), lambda i, j, k: (i, j)),
            scratch_shapes=[pltpu.VMEM((tm, tn), jnp.float32)],
        ),
        compiler_params=pltpu.CompilerParams(
            dimension_semantics=("parallel", "parallel", "arbitrary"),
            vmem_limit_bytes=_vmem_limit_bytes(),
        ),
    )(xp, wp)
    if Mp != M or Np != N:
        out = out[:M, :N]
    return out


# ---------------------------------------------------------------------------
# Rotary tables (positions = arange(seq), Llama default base=10000)
# ---------------------------------------------------------------------------

def rotary_tables(n_pos, head_dim, base=10000.0):
    inv_freq = 1.0 / (base ** (jnp.arange(0, head_dim, 2, dtype=jnp.float32) / head_dim))
    freqs = jnp.arange(n_pos, dtype=jnp.float32)[:, None] * inv_freq[None, :]
    emb = jnp.concatenate([freqs, freqs], axis=-1)  # (n_pos, D)
    return jnp.cos(emb), jnp.sin(emb)


# ---------------------------------------------------------------------------
# Flash-style causal attention: GQA-stacked, fused RoPE, diagonal-only masking
# ---------------------------------------------------------------------------

def _flash_attn_kernel(q_ref, k_ref, v_ref, cos_ref, sin_ref, o_ref,
                       m_sc, l_sc, acc_sc, qrot_sc,
                       *, scale, tq, tk, group, head_dim):
    qi = pl.program_id(2)
    ki = pl.program_id(3)
    nk = pl.num_programs(3)
    G, D = group, head_dim
    half = D // 2
    rows = G * tq

    @pl.when(ki == 0)
    def _init():
        m_sc[...] = jnp.full_like(m_sc, -jnp.inf)
        l_sc[...] = jnp.zeros_like(l_sc)
        acc_sc[...] = jnp.zeros_like(acc_sc)
        # RoPE + 1/sqrt(D), once per (b, kv-head, q-tile); the G query heads sharing
        # this KV head are row-stacked into a (G*tq, D) scratch so the QK^T below is a
        # single wide MXU matmul reusing one K/V tile for the whole group.
        q_start = pl.multiple_of(qi * tq, tq)
        cq = cos_ref[pl.ds(q_start, tq), :].astype(jnp.float32)
        sq = sin_ref[pl.ds(q_start, tq), :].astype(jnp.float32)   # sign-folded sin
        qt = q_ref[0]                                             # (tq, G*D)
        for h in range(G):
            qh = qt[:, h * D:(h + 1) * D].astype(jnp.float32) * scale
            qh = qh * cq + pltpu.roll(qh, half, axis=1) * sq
            qrot_sc[h * tq:(h + 1) * tq, :] = qh.astype(qrot_sc.dtype)

    in_range = ki * tk <= qi * tq + (tq - 1)   # skip KV tiles entirely in the causal future
    on_diag = ki * tk + (tk - 1) > qi * tq     # only boundary tiles need the causal mask

    def _step(apply_mask):
        # RoPE on the K tile (V is not rotated).
        k_start = pl.multiple_of(ki * tk, tk)
        ck = cos_ref[pl.ds(k_start, tk), :].astype(jnp.float32)
        sk = sin_ref[pl.ds(k_start, tk), :].astype(jnp.float32)
        kt = k_ref[0].astype(jnp.float32)
        kt = (kt * ck + pltpu.roll(kt, half, axis=1) * sk).astype(qrot_sc.dtype)

        # (G*tq, D) x (tk, D) contracted over D -- no explicit transpose.
        s = lax.dot_general(qrot_sc[...], kt,
                            dimension_numbers=(((1,), (1,)), ((), ())),
                            preferred_element_type=jnp.float32)    # (G*tq, tk) f32
        if apply_mask:
            r = lax.broadcasted_iota(jnp.int32, (rows, tk), 0)
            q_pos = qi * tq + r % tq
            k_pos = ki * tk + lax.broadcasted_iota(jnp.int32, (rows, tk), 1)
            s = jnp.where(k_pos <= q_pos, s, -1e30)

        m_prev = m_sc[...]
        m_new = jnp.maximum(m_prev, jnp.max(s, axis=-1, keepdims=True))
        alpha = jnp.exp(m_prev - m_new)
        p = jnp.exp(s - m_new)
        l_sc[...] = alpha * l_sc[...] + jnp.sum(p, axis=-1, keepdims=True)
        acc_sc[...] = alpha * acc_sc[...] + jnp.dot(
            p.astype(v_ref.dtype), v_ref[0], preferred_element_type=jnp.float32)
        m_sc[...] = m_new

    @pl.when(jnp.logical_and(in_range, on_diag))
    def _():
        _step(True)

    @pl.when(jnp.logical_and(in_range, jnp.logical_not(on_diag)))
    def _():
        _step(False)

    @pl.when(ki == nk - 1)
    def _fin():
        inv_l = pl.reciprocal(l_sc[...], approx=True)   # EUP slot, ~free
        o = acc_sc[...] * inv_l                          # (G*tq, D) f32
        for h in range(G):
            o_ref[0, :, h * D:(h + 1) * D] = o[h * tq:(h + 1) * tq, :].astype(o_ref.dtype)


def pallas_causal_attention(q, kv, num_heads, num_kv_heads, head_dim, *, tq=512, tk=1024):
    """q: (B, S, nH*D); kv: (B, S, 2*nKV*D) fused [K | V] -> (B, S, nH*D).  Causal, GQA."""
    B, S, _ = q.shape
    D = head_dim
    assert num_heads % num_kv_heads == 0
    G = num_heads // num_kv_heads
    # TODO(synk): head_dim that is not a multiple of 128 needs a different last-dim blocking.
    assert D % 128 == 0, "head_dim must be a multiple of 128 for this lane-blocked layout"

    # Cap stacked (G*tq, tk) f32 score temporaries to a few MiB of VMEM.
    tq = min(tq, max(128, 1024 // G))
    tq = max(8, min(_round_up(tq, 8), _round_up(S, 8)))
    tk = max(8, min(_round_up(tk, 8), _round_up(S, 8)))
    S_pad = _round_up(S, math.lcm(tq, tk))
    if S_pad != S:
        pad = ((0, 0), (0, S_pad - S), (0, 0))
        q = jnp.pad(q, pad)
        kv = jnp.pad(kv, pad)          # padded keys sit in the causal future -> auto-masked
    nq, nk = S_pad // tq, S_pad // tk
    scale = 1.0 / math.sqrt(D)

    # RoPE tables; constant index_map keeps them resident in VMEM for the whole kernel.
    # TODO(synk): for very long sequences (S*D*bytes >> VMEM) switch to blocked cos/sin.
    cos, sin = rotary_tables(S_pad, D)
    half = D // 2
    sin = jnp.concatenate([-sin[:, :half], sin[:, half:]], axis=-1)  # sign-folded rotate_half
    cos = cos.astype(q.dtype)
    sin = sin.astype(q.dtype)

    kernel = functools.partial(_flash_attn_kernel, scale=scale, tq=tq, tk=tk,
                               group=G, head_dim=D)

    def q_map(b, h, qi, ki):
        return (b, qi, h)              # heads h*G..h*G+G-1 are contiguous lanes

    def k_map(b, h, qi, ki):
        # Clamp skipped (fully-masked) KV tiles to the last needed tile: consecutive
        # identical block indices are not re-DMA'd, so skipped steps cost no HBM traffic.
        last = (qi * tq + tq - 1) // tk
        return (b, jnp.minimum(ki, last), h)

    def v_map(b, h, qi, ki):
        last = (qi * tq + tq - 1) // tk
        return (b, jnp.minimum(ki, last), num_kv_heads + h)

    def tbl_map(b, h, qi, ki):
        return (0, 0)

    out = pl.pallas_call(
        kernel,
        out_shape=jax.ShapeDtypeStruct((B, S_pad, num_heads * D), q.dtype),
        grid_spec=pltpu.PrefetchScalarGridSpec(
            num_scalar_prefetch=0,
            grid=(B, num_kv_heads, nq, nk),
            in_specs=[
                pl.BlockSpec((1, tq, G * D), q_map),
                pl.BlockSpec((1, tk, D), k_map),       # K head h from the fused KV output
                pl.BlockSpec((1, tk, D), v_map),       # V head h from the fused KV output
                pl.BlockSpec((S_pad, D), tbl_map),     # cos, VMEM-resident
                pl.BlockSpec((S_pad, D), tbl_map),     # sign-folded sin, VMEM-resident
            ],
            out_specs=pl.BlockSpec((1, tq, G * D), q_map),
            scratch_shapes=[
                pltpu.VMEM((G * tq, 1), jnp.float32),   # running max
                pltpu.VMEM((G * tq, 1), jnp.float32),   # running sum
                pltpu.VMEM((G * tq, D), jnp.float32),   # output accumulator
                pltpu.VMEM((G * tq, D), q.dtype),       # RoPE'd, pre-scaled stacked q
            ],
        ),
        compiler_params=pltpu.CompilerParams(
            dimension_semantics=("parallel", "parallel", "parallel", "arbitrary"),
            vmem_limit_bytes=_vmem_limit_bytes(),
        ),
    )(q, kv, kv, cos, sin)
    if S_pad != S:
        out = out[:, :S, :]
    return out


# ---------------------------------------------------------------------------
# Full forward (matches LlamaAttention.forward with no mask / no KV cache)
# ---------------------------------------------------------------------------

def llama_attention_forward(hidden_states, params, *, num_heads, num_kv_heads, head_dim,
                            attn_q_block=512, attn_kv_block=1024):
    B, S, H = hidden_states.shape
    x2d = hidden_states.reshape(B * S, H)

    q = pallas_linear(x2d, params["q_weight"]).reshape(B, S, num_heads * head_dim)
    # Fused KV projection; K/V heads are selected inside the attention kernel via the
    # BlockSpec index_maps, so there is no XLA column-slice pass over the KV activations.
    kv = pallas_linear(x2d, params["kv_weight"]).reshape(B, S, 2 * num_kv_heads * head_dim)

    attn = pallas_causal_attention(q, kv, num_heads, num_kv_heads, head_dim,
                                   tq=attn_q_block, tk=attn_kv_block)   # (B, S, nH*D)

    out = pallas_linear(attn.reshape(B * S, num_heads * head_dim), params["o_weight"])
    return out.reshape(B, S, H)   # corresponds to (attn_output, None, past_key_value)[0]


# ---------------------------------------------------------------------------
# Plain-JAX reference (f32) for a smoke-test correctness check
# ---------------------------------------------------------------------------

def _rotate_half(x):
    h = x.shape[-1] // 2
    return jnp.concatenate([-x[..., h:], x[..., :h]], axis=-1)


def reference_forward(hidden_states, params, *, num_heads, num_kv_heads, head_dim):
    B, S, H = hidden_states.shape
    x = hidden_states.astype(jnp.float32)
    wq = params["q_weight"].astype(jnp.float32)
    wkv = params["kv_weight"].astype(jnp.float32)
    wo = params["o_weight"].astype(jnp.float32)

    q = x.reshape(B * S, H) @ wq.T
    kv = x.reshape(B * S, H) @ wkv.T
    k = kv[:, : num_kv_heads * head_dim]
    v = kv[:, num_kv_heads * head_dim:]
    q = q.reshape(B, S, num_heads, head_dim)
    k = k.reshape(B, S, num_kv_heads, head_dim)
    v = v.reshape(B, S, num_kv_heads, head_dim)

    cos, sin = rotary_tables(S, head_dim)
    cos = cos[None, :, None, :]
    sin = sin[None, :, None, :]
    q = q * cos + _rotate_half(q) * sin
    k = k * cos + _rotate_half(k) * sin

    G = num_heads // num_kv_heads
    k = jnp.repeat(k, G, axis=2)   # repeat_kv: query head h uses kv head h // G
    v = jnp.repeat(v, G, axis=2)

    s = jnp.einsum("bqhd,bkhd->bhqk", q, k) / math.sqrt(head_dim)
    mask = jnp.tril(jnp.ones((S, S), dtype=bool))
    s = jnp.where(mask[None, None], s, -jnp.inf)
    p = jax.nn.softmax(s, axis=-1)
    o = jnp.einsum("bhqk,bkhd->bqhd", p, v).reshape(B, S, num_heads * head_dim)
    return (o @ wo.T).reshape(B, S, H)


# ---------------------------------------------------------------------------
# Main
# ---------------------------------------------------------------------------

if __name__ == "__main__":
    # Small Llama-like config: head_dim=128 (hardware lane width), 4 query heads over
    # 2 KV heads (GQA group 2), ragged S=40 so the padding path is exercised.
    B, S = 2, 40
    num_heads, num_kv_heads, head_dim = 4, 2, 128
    H = num_heads * head_dim   # hidden_size = 512

    key = jax.random.PRNGKey(0)
    k0, k1, k2, k3 = jax.random.split(key, 4)
    dtype = jnp.bfloat16

    hidden_states = jax.random.normal(k0, (B, S, H), dtype=jnp.float32).astype(dtype)
    params = {
        # PyTorch Linear layout: (out_features, in_features)
        "q_weight": (0.03 * jax.random.normal(k1, (num_heads * head_dim, H))).astype(dtype),
        "kv_weight": (0.03 * jax.random.normal(k2, (2 * num_kv_heads * head_dim, H))).astype(dtype),
        "o_weight": (0.03 * jax.random.normal(k3, (H, num_heads * head_dim))).astype(dtype),
    }

    # Tiny attention tiles so the flash grid, causal tile-skipping, diagonal-only
    # masking, sequence padding (40 -> 48) and the GQA-stacked q path are all exercised.
    out = llama_attention_forward(
        hidden_states, params,
        num_heads=num_heads, num_kv_heads=num_kv_heads, head_dim=head_dim,
        attn_q_block=8, attn_kv_block=16,
    )
    jax.block_until_ready(out)
    assert out.shape == (B, S, H)

    ref = reference_forward(
        hidden_states, params,
        num_heads=num_heads, num_kv_heads=num_kv_heads, head_dim=head_dim,
    )
    err = jnp.max(jnp.abs(out.astype(jnp.float32) - ref))
    assert float(err) < 0.25, f"max abs err {float(err)}"
    print("KERNEL_OK")
</pallas_src>

<mosaic_0001>
module attributes {stable_mosaic.version = 11 : i64} {
  func.func @_linear_kernel(%arg0: i32, %arg1: i32, %arg2: i32, %arg3: memref<80x512xbf16, #tpu.memory_space<vmem>>, %arg4: memref<512x512xbf16, #tpu.memory_space<vmem>>, %arg5: memref<80x512xbf16, #tpu.memory_space<vmem>>, %arg6: memref<80x512xf32, #tpu.memory_space<vmem>>) attributes {dimension_semantics = [#tpu.dimension_semantics<parallel>, #tpu.dimension_semantics<parallel>, #tpu.dimension_semantics<arbitrary>], iteration_bounds = array<i64: 1, 1, 1>, scalar_prefetch = 0 : i64, scratch_operands = 1 : i64, tpu.core_type = #tpu.core_type<tc>, window_params = [{transform_indices = @transform_0, window_bounds = array<i64: 80, 512>}, {transform_indices = @transform_1, window_bounds = array<i64: 512, 512>}, {transform_indices = @transform_2, window_bounds = array<i64: 80, 512>}]} {
    %c0_i32 = arith.constant 0 : i32
    %0 = arith.cmpi eq, %arg2, %c0_i32 : i32
    %1 = arith.extui %0 : i1 to i32
    %c0_i32_0 = arith.constant 0 : i32
    %2 = arith.cmpi ne, %1, %c0_i32_0 : i32
    scf.if %2 {
      %cst_10 = arith.constant 0.000000e+00 : f32
      %12 = vector.broadcast %cst_10 : f32 to vector<80x512xf32>
      %c0_11 = arith.constant 0 : index
      %c0_12 = arith.constant 0 : index
      %13 = vector.load %arg6[%c0_11, %c0_12] : memref<80x512xf32, #tpu.memory_space<vmem>>, vector<80x512xf32>
      tpu.vector_store %arg6[%c0_11, %c0_12], %12 {strides = array<i32>} : memref<80x512xf32, #tpu.memory_space<vmem>>, vector<80x512xf32>,
    } else {
    }
    %c0 = arith.constant 0 : index
    %c0_1 = arith.constant 0 : index
    %3 = vector.load %arg6[%c0, %c0_1] : memref<80x512xf32, #tpu.memory_space<vmem>>, vector<80x512xf32>
    %c0_2 = arith.constant 0 : index
    %c0_3 = arith.constant 0 : index
    %4 = vector.load %arg3[%c0_2, %c0_3] : memref<80x512xbf16, #tpu.memory_space<vmem>>, vector<80x512xbf16>
    %c0_4 = arith.constant 0 : index
    %c0_5 = arith.constant 0 : index
    %5 = vector.load %arg4[%c0_4, %c0_5] : memref<512x512xbf16, #tpu.memory_space<vmem>>, vector<512x512xbf16>
    %cst = arith.constant dense<0.000000e+00> : vector<80x512xf32>
    %6 = tpu.matmul %4, %5, %cst {dimension_numbers = #tpu.dot_dimension_numbers<[1], [1], [0], [0], [0, 0, 1, 0], [], []>} : vector<80x512xbf16>, vector<512x512xbf16>, vector<80x512xf32> -> vector<80x512xf32>
    %7 = arith.addf %3, %6 : vector<80x512xf32>
    %c0_6 = arith.constant 0 : index
    %c0_7 = arith.constant 0 : index
    %8 = vector.load %arg6[%c0_6, %c0_7] : memref<80x512xf32, #tpu.memory_space<vmem>>, vector<80x512xf32>
    tpu.vector_store %arg6[%c0_6, %c0_7], %7 {strides = array<i32>} : memref<80x512xf32, #tpu.memory_space<vmem>>, vector<80x512xf32>,
    %c0_i32_8 = arith.constant 0 : i32
    %9 = arith.cmpi eq, %arg2, %c0_i32_8 : i32
    %10 = arith.extui %9 : i1 to i32
    %c0_i32_9 = arith.constant 0 : i32
    %11 = arith.cmpi ne, %10, %c0_i32_9 : i32
    scf.if %11 {
      %c0_10 = arith.constant 0 : index
      %c0_11 = arith.constant 0 : index
      %12 = vector.load %arg6[%c0_10, %c0_11] : memref<80x512xf32, #tpu.memory_space<vmem>>, vector<80x512xf32>
      %13 = arith.truncf %12 : vector<80x512xf32> to vector<80x512xbf16>
      %c0_12 = arith.constant 0 : index
      %c0_13 = arith.constant 0 : index
      %14 = vector.load %arg5[%c0_12, %c0_13] : memref<80x512xbf16, #tpu.memory_space<vmem>>, vector<80x512xbf16>
      tpu.vector_store %arg5[%c0_12, %c0_13], %13 {strides = array<i32>} : memref<80x512xbf16, #tpu.memory_space<vmem>>, vector<80x512xbf16>,
    } else {
    }
    return
  }
  func.func @transform_0(%arg0: i32, %arg1: i32, %arg2: i32) -> (i32, i32) {
    %c0_i32 = arith.constant 0 : i32
    return %arg0, %arg2 : i32, i32
  }
  func.func @transform_1(%arg0: i32, %arg1: i32, %arg2: i32) -> (i32, i32) {
    %c0_i32 = arith.constant 0 : i32
    return %arg1, %arg2 : i32, i32
  }
  func.func @transform_2(%arg0: i32, %arg1: i32, %arg2: i32) -> (i32, i32) {
    %c0_i32 = arith.constant 0 : i32
    return %arg0, %arg1 : i32, i32
  }
}

</mosaic_0001>

<llo_original>
// kernel: tpu_custom_call.1
$region0: #{tpu_custom_call.1}
  #allocation0 [shape = 'u32[]', space=smem, size = 0x4, offset = 0x4, fixed_abs, tag = 'smem constant byte address 0x4 - core index']
  #allocation1 [shape = 'u32[144,128]{1,0:T(1,128)}', space=vmem, size = 0x12000, scoped, tag = 'internal scratch']
  #allocation2 [shape = 'f32[80,512]{1,0:T(8,128)}', space=vmem, size = 0x28000, scoped, tag = 'scratch operand']
  %s0 = inlined_call_operand.hbm [shape: bf16[80,512], index: 0, kind: input, shape index: {}]
  %s1 = inlined_call_operand.hbm [shape: bf16[512,512], index: 1, kind: input, shape index: {}]
  %s2 = inlined_call_operand.hbm [shape: bf16[80,512], index: 2, kind: output, shape index: {}]
  %s3 = sld [smem:[#allocation0]]
  $region34: #{tpu_custom_call.1} parent=0
    _
  %s5 = ssub.s32 1, %s3
  %s6 = scalar_select 0, %s5, %s3
  $region1: #{tpu_custom_call.1} parent=0
    #allocation3 [shape = 'u8[81920]{0}', space=vmem, size = 0x14000, scoped, tag = 'input window, operand 0, single buffered']
    #allocation4 [shape = 's32[1]{0}', space=sflag, size = 0x4, scoped, tag = 'scoped memory for tpu_custom_call.1']
    #allocation5 [shape = 's32[1]{0}', space=sflag, size = 0x4, scoped, tag = 'scoped memory for tpu_custom_call.1']
    #allocation6 [shape = 'u8[524288]{0}', space=vmem, size = 0x80000, scoped, tag = 'input window, operand 1, single buffered']
    #allocation7 [shape = 's32[1]{0}', space=sflag, size = 0x4, scoped, tag = 'scoped memory for tpu_custom_call.1']
    #allocation8 [shape = 'u8[81920]{0}', space=vmem, size = 0x14000, scoped, tag = 'output window, operand 0, single buffered']
    %7 = vsyncpa [#allocation4], 0
    %8 = vsyncpa [#allocation7], 0
    %9 = vsyncpa [#allocation5], 0
    // Predicated region
    $region2: #{tpu_custom_call.1} parent=1 // pred_check
      _
    $region3: #{tpu_custom_call.1} parent=1 // pred_check_branch
      %11 = sbr.rel (0) target = $region5
    $region4: #{tpu_custom_call.1} parent=1 // pred_region
      %s13 = ssub.s32 2560, 2560
      %14 = vsyncadd [#allocation4], %s13
      %s15 = sshll.u32 [#allocation3], 4
      %s16 = int_to_ptr.vmem [resolvable:$true] %s15
      %21 = dma.hbm_to_vmem [thread:$0]  %s0, 2560, %s16, [#allocation4], 256, 256, 16
    $region5: #{tpu_custom_call.1} parent=1 // pred_fallthru
      _
    // Predicated region
    $region6: #{tpu_custom_call.1} parent=1 // pred_check
      _
    $region7: #{tpu_custom_call.1} parent=1 // pred_check_branch
      %23 = sbr.rel (0) target = $region9
    $region8: #{tpu_custom_call.1} parent=1 // pred_region
      %s25 = ssub.s32 16384, 16384
      %26 = vsyncadd [#allocation7], %s25
      %s27 = sshll.u32 [#allocation6], 4
      %s28 = int_to_ptr.vmem [resolvable:$true] %s27
      %33 = dma.hbm_to_vmem [thread:$0]  %s1, 16384, %s28, [#allocation7], 256, 256, 16
    $region9: #{tpu_custom_call.1} parent=1 // pred_fallthru
      _
    // Predicated region
    $region10: #{tpu_custom_call.1} parent=1 // pred_check
      _
    $region11: #{tpu_custom_call.1} parent=1 // pred_check_branch
      %35 = sbr.rel (0) target = $region13
    $region12: #{tpu_custom_call.1} parent=1 // pred_region
      %36 = dma.done [#allocation4], 2560
    $region13: #{tpu_custom_call.1} parent=1 // pred_fallthru
      _
    // Predicated region
    $region14: #{tpu_custom_call.1} parent=1 // pred_check
      _
    $region15: #{tpu_custom_call.1} parent=1 // pred_check_branch
      %38 = sbr.rel (0) target = $region17
    $region16: #{tpu_custom_call.1} parent=1 // pred_region
      %39 = dma.done [#allocation7], 16384
    $region17: #{tpu_custom_call.1} parent=1 // pred_fallthru
      _
    %p40 = scmp.eq.s32.totalorder 0, 0
    // Predicated region
    $region18: #{tpu_custom_call.1} parent=1 // pred_check
      %p41 = pneg %p40
    $region19: #{tpu_custom_call.1} parent=1 // pred_check_branch
      %43 = sbr.rel (%p41) target = $region21
    $region20: #{tpu_custom_call.1} parent=1 // pred_region
      %44 = vst [vmem:[#allocation2] sm:$0xff] 0.0
      %45 = vst [vmem:[#allocation2 + $0x8] sm:$0xff] 0.0
      %46 = vst [vmem:[#allocation2 + $0x10] sm:$0xff] 0.0
      %47 = vst [vmem:[#allocation2 + $0x18] sm:$0xff] 0.0
      %48 = vst [vmem:[#allocation2 + $0x20] sm:$0xff] 0.0
      %49 = vst [vmem:[#allocation2 + $0x28] sm:$0xff] 0.0
      %50 = vst [vmem:[#allocation2 + $0x30] sm:$0xff] 0.0
      %51 = vst [vmem:[#allocation2 + $0x38] sm:$0xff] 0.0
      %52 = vst [vmem:[#allocation2 + $0x40] sm:$0xff] 0.0
      %53 = vst [vmem:[#allocation2 + $0x48] sm:$0xff] 0.0
      %54 = vst [vmem:[#allocation2 + $0x50] sm:$0xff] 0.0
      %55 = vst [vmem:[#allocation2 + $0x58] sm:$0xff] 0.0
      %56 = vst [vmem:[#allocation2 + $0x60] sm:$0xff] 0.0
      %57 = vst [vmem:[#allocation2 + $0x68] sm:$0xff] 0.0
      %58 = vst [vmem:[#allocation2 + $0x70] sm:$0xff] 0.0
      %59 = vst [vmem:[#allocation2 + $0x78] sm:$0xff] 0.0
      %60 = vst [vmem:[#allocation2 + $0x80] sm:$0xff] 0.0
      %61 = vst [vmem:[#allocation2 + $0x88] sm:$0xff] 0.0
      %62 = vst [vmem:[#allocation2 + $0x90] sm:$0xff] 0.0
      %63 = vst [vmem:[#allocation2 + $0x98] sm:$0xff] 0.0
      %64 = vst [vmem:[#allocation2 + $0xa0] sm:$0xff] 0.0
      %65 = vst [vmem:[#allocation2 + $0xa8] sm:$0xff] 0.0
      %66 = vst [vmem:[#allocation2 + $0xb0] sm:$0xff] 0.0
      %67 = vst [vmem:[#allocation2 + $0xb8] sm:$0xff] 0.0
      %68 = vst [vmem:[#allocation2 + $0xc0] sm:$0xff] 0.0
      %69 = vst [vmem:[#allocation2 + $0xc8] sm:$0xff] 0.0
      %70 = vst [vmem:[#allocation2 + $0xd0] sm:$0xff] 0.0
      %71 = vst [vmem:[#allocation2 + $0xd8] sm:$0xff] 0.0
      %72 = vst [vmem:[#allocation2 + $0xe0] sm:$0xff] 0.0
      %73 = vst [vmem:[#allocation2 + $0xe8] sm:$0xff] 0.0
      %74 = vst [vmem:[#allocation2 + $0xf0] sm:$0xff] 0.0
      %75 = vst [vmem:[#allocation2 + $0xf8] sm:$0xff] 0.0
      %76 = vst [vmem:[#allocation2 + $0x100] sm:$0xff] 0.0
      %77 = vst [vmem:[#allocation2 + $0x108] sm:$0xff] 0.0
      %78 = vst [vmem:[#allocation2 + $0x110] sm:$0xff] 0.0
      %79 = vst [vmem:[#allocation2 + $0x118] sm:$0xff] 0.0
      %80 = vst [vmem:[#allocation2 + $0x120] sm:$0xff] 0.0
      %81 = vst [vmem:[#allocation2 + $0x128] sm:$0xff] 0.0
      %82 = vst [vmem:[#allocation2 + $0x130] sm:$0xff] 0.0
      %83 = vst [vmem:[#allocation2 + $0x138] sm:$0xff] 0.0
    $region21: #{tpu_custom_call.1} parent=1 // pred_fallthru
      _
    %v84 = vld [vmem:[#allocation2] sm:$0xff]
    %v85 = vld [vmem:[#allocation2 + $0x8] sm:$0xff]
    %v86 = vld [vmem:[#allocation2 + $0x10] sm:$0xff]
    %v87 = vld [vmem:[#allocation2 + $0x18] sm:$0xff]
    %v88 = vld [vmem:[#allocation2 + $0x20] sm:$0xff]
    %v89 = vld [vmem:[#allocation2 + $0x28] sm:$0xff]
    %v90 = vld [vmem:[#allocation2 + $0x30] sm:$0xff]
    %v91 = vld [vmem:[#allocation2 + $0x38] sm:$0xff]
    %v92 = vld [vmem:[#allocation2 + $0x40] sm:$0xff]
    %v93 = vld [vmem:[#allocation2 + $0x48] sm:$0xff]
    %v94 = vld [vmem:[#allocation2 + $0x50] sm:$0xff]
    %v95 = vld [vmem:[#allocation2 + $0x58] sm:$0xff]
    %v96 = vld [vmem:[#allocation2 + $0x60] sm:$0xff]
    %v97 = vld [vmem:[#allocation2 + $0x68] sm:$0xff]
    %v98 = vld [vmem:[#allocation2 + $0x70] sm:$0xff]
    %v99 = vld [vmem:[#allocation2 + $0x78] sm:$0xff]
    %v100 = vld [vmem:[#allocation2 + $0x80] sm:$0xff]
    %v101 = vld [vmem:[#allocation2 + $0x88] sm:$0xff]
    %v102 = vld [vmem:[#allocation2 + $0x90] sm:$0xff]
    %v103 = vld [vmem:[#allocation2 + $0x98] sm:$0xff]
    %v104 = vld [vmem:[#allocation2 + $0xa0] sm:$0xff]
    %v105 = vld [vmem:[#allocation2 + $0xa8] sm:$0xff]
    %v106 = vld [vmem:[#allocation2 + $0xb0] sm:$0xff]
    %v107 = vld [vmem:[#allocation2 + $0xb8] sm:$0xff]
    %v108 = vld [vmem:[#allocation2 + $0xc0] sm:$0xff]
    %v109 = vld [vmem:[#allocation2 + $0xc8] sm:$0xff]
    %v110 = vld [vmem:[#allocation2 + $0xd0] sm:$0xff]
    %v111 = vld [vmem:[#allocation2 + $0xd8] sm:$0xff]
    %v112 = vld [vmem:[#allocation2 + $0xe0] sm:$0xff]
    %v113 = vld [vmem:[#allocation2 + $0xe8] sm:$0xff]
    %v114 = vld [vmem:[#allocation2 + $0xf0] sm:$0xff]
    %v115 = vld [vmem:[#allocation2 + $0xf8] sm:$0xff]
    %v116 = vld [vmem:[#allocation2 + $0x100] sm:$0xff]
    %v117 = vld [vmem:[#allocation2 + $0x108] sm:$0xff]
    %v118 = vld [vmem:[#allocation2 + $0x110] sm:$0xff]
    %v119 = vld [vmem:[#allocation2 + $0x118] sm:$0xff]
    %v120 = vld [vmem:[#allocation2 + $0x120] sm:$0xff]
    %v121 = vld [vmem:[#allocation2 + $0x128] sm:$0xff]
    %v122 = vld [vmem:[#allocation2 + $0x130] sm:$0xff]
    %v123 = vld [vmem:[#allocation2 + $0x138] sm:$0xff]
    %v124 = vld [vmem:[#allocation3] sm:$0xff]
    %v125 = vld [vmem:[#allocation3 + $0x8] sm:$0xff]
    %v126 = vld [vmem:[#allocation3 + $0x10] sm:$0xff]
    %v127 = vld [vmem:[#allocation3 + $0x18] sm:$0xff]
    %v128 = vld [vmem:[#allocation3 + $0x20] sm:$0xff]
    %v129 = vld [vmem:[#allocation3 + $0x28] sm:$0xff]
    %v130 = vld [vmem:[#allocation3 + $0x30] sm:$0xff]
    %v131 = vld [vmem:[#allocation3 + $0x38] sm:$0xff]
    %v132 = vld [vmem:[#allocation3 + $0x40] sm:$0xff]
    %v133 = vld [vmem:[#allocation3 + $0x48] sm:$0xff]
    %v134 = vld [vmem:[#allocation3 + $0x50] sm:$0xff]
    %v135 = vld [vmem:[#allocation3 + $0x58] sm:$0xff]
    %v136 = vld [vmem:[#allocation3 + $0x60] sm:$0xff]
    %v137 = vld [vmem:[#allocation3 + $0x68] sm:$0xff]
    %v138 = vld [vmem:[#allocation3 + $0x70] sm:$0xff]
    %v139 = vld [vmem:[#allocation3 + $0x78] sm:$0xff]
    %v140 = vld [vmem:[#allocation3 + $0x80] sm:$0xff]
    %v141 = vld [vmem:[#allocation3 + $0x88] sm:$0xff]
    %v142 = vld [vmem:[#allocation3 + $0x90] sm:$0xff]
    %v143 = vld [vmem:[#allocation3 + $0x98] sm:$0xff]
    %v144 = vld [vmem:[#allocation6] sm:$0xff]
    %v145 = vld [vmem:[#allocation6 + $0x8] sm:$0xff]
    %v146 = vld [vmem:[#allocation6 + $0x10] sm:$0xff]
    %v147 = vld [vmem:[#allocation6 + $0x18] sm:$0xff]
    %v148 = vld [vmem:[#allocation6 + $0x20] sm:$0xff]
    %v149 = vld [vmem:[#allocation6 + $0x28] sm:$0xff]
    %v150 = vld [vmem:[#allocation6 + $0x30] sm:$0xff]
    %v151 = vld [vmem:[#allocation6 + $0x38] sm:$0xff]
    %v152 = vld [vmem:[#allocation6 + $0x40] sm:$0xff]
    %v153 = vld [vmem:[#allocation6 + $0x48] sm:$0xff]
    %v154 = vld [vmem:[#allocation6 + $0x50] sm:$0xff]
    %v155 = vld [vmem:[#allocation6 + $0x58] sm:$0xff]
    %v156 = vld [vmem:[#allocation6 + $0x60] sm:$0xff]
    %v157 = vld [vmem:[#allocation6 + $0x68] sm:$0xff]
    %v158 = vld [vmem:[#allocation6 + $0x70] sm:$0xff]
    %v159 = vld [vmem:[#allocation6 + $0x78] sm:$0xff]
    %v160 = vld [vmem:[#allocation6 + $0x80] sm:$0xff]
    %v161 = vld [vmem:[#allocation6 + $0x88] sm:$0xff]
    %v162 = vld [vmem:[#allocation6 + $0x90] sm:$0xff]
    %v163 = vld [vmem:[#allocation6 + $0x98] sm:$0xff]
    %v164 = vld [vmem:[#allocation6 + $0xa0] sm:$0xff]
    %v165 = vld [vmem:[#allocation6 + $0xa8] sm:$0xff]
    %v166 = vld [vmem:[#allocation6 + $0xb0] sm:$0xff]
    %v167 = vld [vmem:[#allocation6 + $0xb8] sm:$0xff]
    %v168 = vld [vmem:[#allocation6 + $0xc0] sm:$0xff]
    %v169 = vld [vmem:[#allocation6 + $0xc8] sm:$0xff]
    %v170 = vld [vmem:[#allocation6 + $0xd0] sm:$0xff]
    %v171 = vld [vmem:[#allocation6 + $0xd8] sm:$0xff]
    %v172 = vld [vmem:[#allocation6 + $0xe0] sm:$0xff]
    %v173 = vld [vmem:[#allocation6 + $0xe8] sm:$0xff]
    %v174 = vld [vmem:[#allocation6 + $0xf0] sm:$0xff]
    %v175 = vld [vmem:[#allocation6 + $0xf8] sm:$0xff]
    %v176 = vld [vmem:[#allocation6 + $0x100] sm:$0xff]
    %v177 = vld [vmem:[#allocation6 + $0x108] sm:$0xff]
    %v178 = vld [vmem:[#allocation6 + $0x110] sm:$0xff]
    %v179 = vld [vmem:[#allocation6 + $0x118] sm:$0xff]
    %v180 = vld [vmem:[#allocation6 + $0x120] sm:$0xff]
    %v181 = vld [vmem:[#allocation6 + $0x128] sm:$0xff]
    %v182 = vld [vmem:[#allocation6 + $0x130] sm:$0xff]
    %v183 = vld [vmem:[#allocation6 + $0x138] sm:$0xff]
    %v184 = vld [vmem:[#allocation6 + $0x140] sm:$0xff]
    %v185 = vld [vmem:[#allocation6 + $0x148] sm:$0xff]
    %v186 = vld [vmem:[#allocation6 + $0x150] sm:$0xff]
    %v187 = vld [vmem:[#allocation6 + $0x158] sm:$0xff]
    %v188 = vld [vmem:[#allocation6 + $0x160] sm:$0xff]
    %v189 = vld [vmem:[#allocation6 + $0x168] sm:$0xff]
    %v190 = vld [vmem:[#allocation6 + $0x170] sm:$0xff]
    %v191 = vld [vmem:[#allocation6 + $0x178] sm:$0xff]
    %v192 = vld [vmem:[#allocation6 + $0x180] sm:$0xff]
    %v193 = vld [vmem:[#allocation6 + $0x188] sm:$0xff]
    %v194 = vld [vmem:[#allocation6 + $0x190] sm:$0xff]
    %v195 = vld [vmem:[#allocation6 + $0x198] sm:$0xff]
    %v196 = vld [vmem:[#allocation6 + $0x1a0] sm:$0xff]
    %v197 = vld [vmem:[#allocation6 + $0x1a8] sm:$0xff]
    %v198 = vld [vmem:[#allocation6 + $0x1b0] sm:$0xff]
    %v199 = vld [vmem:[#allocation6 + $0x1b8] sm:$0xff]
    %v200 = vld [vmem:[#allocation6 + $0x1c0] sm:$0xff]
    %v201 = vld [vmem:[#allocation6 + $0x1c8] sm:$0xff]
    %v202 = vld [vmem:[#allocation6 + $0x1d0] sm:$0xff]
    %v203 = vld [vmem:[#allocation6 + $0x1d8] sm:$0xff]
    %v204 = vld [vmem:[#allocation6 + $0x1e0] sm:$0xff]
    %v205 = vld [vmem:[#allocation6 + $0x1e8] sm:$0xff]
    %v206 = vld [vmem:[#allocation6 + $0x1f0] sm:$0xff]
    %v207 = vld [vmem:[#allocation6 + $0x1f8] sm:$0xff]
    %v208 = vld [vmem:[#allocation6 + $0x200] sm:$0xff]
    %v209 = vld [vmem:[#allocation6 + $0x208] sm:$0xff]
    %v210 = vld [vmem:[#allocation6 + $0x210] sm:$0xff]
    %v211 = vld [vmem:[#allocation6 + $0x218] sm:$0xff]
    %v212 = vld [vmem:[#allocation6 + $0x220] sm:$0xff]
    %v213 = vld [vmem:[#allocation6 + $0x228] sm:$0xff]
    %v214 = vld [vmem:[#allocation6 + $0x230] sm:$0xff]
    %v215 = vld [vmem:[#allocation6 + $0x238] sm:$0xff]
    %v216 = vld [vmem:[#allocation6 + $0x240] sm:$0xff]
    %v217 = vld [vmem:[#allocation6 + $0x248] sm:$0xff]
    %v218 = vld [vmem:[#allocation6 + $0x250] sm:$0xff]
    %v219 = vld [vmem:[#allocation6 + $0x258] sm:$0xff]
    %v220 = vld [vmem:[#allocation6 + $0x260] sm:$0xff]
    %v221 = vld [vmem:[#allocation6 + $0x268] sm:$0xff]
    %v222 = vld [vmem:[#allocation6 + $0x270] sm:$0xff]
    %v223 = vld [vmem:[#allocation6 + $0x278] sm:$0xff]
    %v224 = vld [vmem:[#allocation6 + $0x280] sm:$0xff]
    %v225 = vld [vmem:[#allocation6 + $0x288] sm:$0xff]
    %v226 = vld [vmem:[#allocation6 + $0x290] sm:$0xff]
    %v227 = vld [vmem:[#allocation6 + $0x298] sm:$0xff]
    %v228 = vld [vmem:[#allocation6 + $0x2a0] sm:$0xff]
    %v229 = vld [vmem:[#allocation6 + $0x2a8] sm:$0xff]
    %v230 = vld [vmem:[#allocation6 + $0x2b0] sm:$0xff]
    %v231 = vld [vmem:[#allocation6 + $0x2b8] sm:$0xff]
    %v232 = vld [vmem:[#allocation6 + $0x2c0] sm:$0xff]
    %v233 = vld [vmem:[#allocation6 + $0x2c8] sm:$0xff]
    %v234 = vld [vmem:[#allocation6 + $0x2d0] sm:$0xff]
    %v235 = vld [vmem:[#allocation6 + $0x2d8] sm:$0xff]
    %v236 = vld [vmem:[#allocation6 + $0x2e0] sm:$0xff]
    %v237 = vld [vmem:[#allocation6 + $0x2e8] sm:$0xff]
    %v238 = vld [vmem:[#allocation6 + $0x2f0] sm:$0xff]
    %v239 = vld [vmem:[#allocation6 + $0x2f8] sm:$0xff]
    %v240 = vld [vmem:[#allocation6 + $0x300] sm:$0xff]
    %v241 = vld [vmem:[#allocation6 + $0x308] sm:$0xff]
    %v242 = vld [vmem:[#allocation6 + $0x310] sm:$0xff]
    %v243 = vld [vmem:[#allocation6 + $0x318] sm:$0xff]
    %v244 = vld [vmem:[#allocation6 + $0x320] sm:$0xff]
    %v245 = vld [vmem:[#allocation6 + $0x328] sm:$0xff]
    %v246 = vld [vmem:[#allocation6 + $0x330] sm:$0xff]
    %v247 = vld [vmem:[#allocation6 + $0x338] sm:$0xff]
    %v248 = vld [vmem:[#allocation6 + $0x340] sm:$0xff]
    %v249 = vld [vmem:[#allocation6 + $0x348] sm:$0xff]
    %v250 = vld [vmem:[#allocation6 + $0x350] sm:$0xff]
    %v251 = vld [vmem:[#allocation6 + $0x358] sm:$0xff]
    %v252 = vld [vmem:[#allocation6 + $0x360] sm:$0xff]
    %v253 = vld [vmem:[#allocation6 + $0x368] sm:$0xff]
    %v254 = vld [vmem:[#allocation6 + $0x370] sm:$0xff]
    %v255 = vld [vmem:[#allocation6 + $0x378] sm:$0xff]
    %v256 = vld [vmem:[#allocation6 + $0x380] sm:$0xff]
    %v257 = vld [vmem:[#allocation6 + $0x388] sm:$0xff]
    %v258 = vld [vmem:[#allocation6 + $0x390] sm:$0xff]
    %v259 = vld [vmem:[#allocation6 + $0x398] sm:$0xff]
    %v260 = vld [vmem:[#allocation6 + $0x3a0] sm:$0xff]
    %v261 = vld [vmem:[#allocation6 + $0x3a8] sm:$0xff]
    %v262 = vld [vmem:[#allocation6 + $0x3b0] sm:$0xff]
    %v263 = vld [vmem:[#allocation6 + $0x3b8] sm:$0xff]
    %v264 = vld [vmem:[#allocation6 + $0x3c0] sm:$0xff]
    %v265 = vld [vmem:[#allocation6 + $0x3c8] sm:$0xff]
    %v266 = vld [vmem:[#allocation6 + $0x3d0] sm:$0xff]
    %v267 = vld [vmem:[#allocation6 + $0x3d8] sm:$0xff]
    %v268 = vld [vmem:[#allocation6 + $0x3e0] sm:$0xff]
    %v269 = vld [vmem:[#allocation6 + $0x3e8] sm:$0xff]
    %v270 = vld [vmem:[#allocation6 + $0x3f0] sm:$0xff]
    %v271 = vld [vmem:[#allocation6 + $0x3f8] sm:$0xff]
    %v292 = vunpack.c.l.b16 %v124
    %v293 = vunpack.c.h.b16 %v124
    %v294 = vunpack.c.l.b16 %v125
    %v295 = vunpack.c.h.b16 %v125
    %v296 = vunpack.c.l.b16 %v126
    %v297 = vunpack.c.h.b16 %v126
    %v298 = vunpack.c.l.b16 %v127
    %v299 = vunpack.c.h.b16 %v127
    %v300 = vunpack.c.l.b16 %v128
    %v301 = vunpack.c.h.b16 %v128
    %v302 = vunpack.c.l.b16 %v129
    %v303 = vunpack.c.h.b16 %v129
    %v304 = vunpack.c.l.b16 %v130
    %v305 = vunpack.c.h.b16 %v130
    %v306 = vunpack.c.l.b16 %v131
    %v307 = vunpack.c.h.b16 %v131
    %v308 = vunpack.c.l.b16 %v132
    %v309 = vunpack.c.h.b16 %v132
    %v310 = vunpack.c.l.b16 %v133
    %v311 = vunpack.c.h.b16 %v133
    %v312 = vunpack.c.l.b16 %v134
    %v313 = vunpack.c.h.b16 %v134
    %v314 = vunpack.c.l.b16 %v135
    %v315 = vunpack.c.h.b16 %v135
    %v316 = vunpack.c.l.b16 %v136
    %v317 = vunpack.c.h.b16 %v136
    %v318 = vunpack.c.l.b16 %v137
    %v319 = vunpack.c.h.b16 %v137
    %v320 = vunpack.c.l.b16 %v138
    %v321 = vunpack.c.h.b16 %v138
    %v322 = vunpack.c.l.b16 %v139
    %v323 = vunpack.c.h.b16 %v139
    %v324 = vunpack.c.l.b16 %v140
    %v325 = vunpack.c.h.b16 %v140
    %v326 = vunpack.c.l.b16 %v141
    %v327 = vunpack.c.h.b16 %v141
    %v328 = vunpack.c.l.b16 %v142
    %v329 = vunpack.c.h.b16 %v142
    %v330 = vunpack.c.l.b16 %v143
    %v331 = vunpack.c.h.b16 %v143
    %v332 = vpack.c.b16 %v296, %v292
    %v333 = vpack.c.b16 %v297, %v293
    %v334 = vpack.c.b16 %v298, %v294
    %v335 = vpack.c.b16 %v299, %v295
    %v336 = vpack.c.b16 %v304, %v300
    %v337 = vpack.c.b16 %v305, %v301
    %v338 = vpack.c.b16 %v306, %v302
    %v339 = vpack.c.b16 %v307, %v303
    %v340 = vpack.c.b16 %v312, %v308
    %v341 = vpack.c.b16 %v313, %v309
    %v342 = vpack.c.b16 %v314, %v310
    %v343 = vpack.c.b16 %v315, %v311
    %v344 = vpack.c.b16 %v320, %v316
    %v345 = vpack.c.b16 %v321, %v317
    %v346 = vpack.c.b16 %v322, %v318
    %v347 = vpack.c.b16 %v323, %v319
    %v348 = vpack.c.b16 %v328, %v324
    %v349 = vpack.c.b16 %v329, %v325
    %v350 = vpack.c.b16 %v330, %v326
    %v351 = vpack.c.b16 %v331, %v327
    %v500 = vunpack.c.l.b16 %v144
    %v501 = vunpack.c.h.b16 %v144
    %v502 = vunpack.c.l.b16 %v145
    %v503 = vunpack.c.h.b16 %v145
    %v504 = vunpack.c.l.b16 %v146
    %v505 = vunpack.c.h.b16 %v146
    %v506 = vunpack.c.l.b16 %v147
    %v507 = vunpack.c.h.b16 %v147
    %v508 = vunpack.c.l.b16 %v148
    %v509 = vunpack.c.h.b16 %v148
    %v510 = vunpack.c.l.b16 %v149
    %v511 = vunpack.c.h.b16 %v149
    %v512 = vunpack.c.l.b16 %v150
    %v513 = vunpack.c.h.b16 %v150
    %v514 = vunpack.c.l.b16 %v151
    %v515 = vunpack.c.h.b16 %v151
    %v516 = vunpack.c.l.b16 %v152
    %v517 = vunpack.c.h.b16 %v152
    %v518 = vunpack.c.l.b16 %v153
    %v519 = vunpack.c.h.b16 %v153
    %v520 = vunpack.c.l.b16 %v154
    %v521 = vunpack.c.h.b16 %v154
    %v522 = vunpack.c.l.b16 %v155
    %v523 = vunpack.c.h.b16 %v155
    %v524 = vunpack.c.l.b16 %v156
    %v525 = vunpack.c.h.b16 %v156
    %v526 = vunpack.c.l.b16 %v157
    %v527 = vunpack.c.h.b16 %v157
    %v528 = vunpack.c.l.b16 %v158
    %v529 = vunpack.c.h.b16 %v158
    %v530 = vunpack.c.l.b16 %v159
    %v531 = vunpack.c.h.b16 %v159
    %v532 = vunpack.c.l.b16 %v160
    %v533 = vunpack.c.h.b16 %v160
    %v534 = vunpack.c.l.b16 %v161
    %v535 = vunpack.c.h.b16 %v161
    %v536 = vunpack.c.l.b16 %v162
    %v537 = vunpack.c.h.b16 %v162
    %v538 = vunpack.c.l.b16 %v163
    %v539 = vunpack.c.h.b16 %v163
    %v540 = vunpack.c.l.b16 %v164
    %v541 = vunpack.c.h.b16 %v164
    %v542 = vunpack.c.l.b16 %v165
    %v543 = vunpack.c.h.b16 %v165
    %v544 = vunpack.c.l.b16 %v166
    %v545 = vunpack.c.h.b16 %v166
    %v546 = vunpack.c.l.b16 %v167
    %v547 = vunpack.c.h.b16 %v167
    %v548 = vunpack.c.l.b16 %v168
    %v549 = vunpack.c.h.b16 %v168
    %v550 = vunpack.c.l.b16 %v169
    %v551 = vunpack.c.h.b16 %v169
    %v552 = vunpack.c.l.b16 %v170
    %v553 = vunpack.c.h.b16 %v170
    %v554 = vunpack.c.l.b16 %v171
    %v555 = vunpack.c.h.b16 %v171
    %v556 = vunpack.c.l.b16 %v172
    %v557 = vunpack.c.h.b16 %v172
    %v558 = vunpack.c.l.b16 %v173
    %v559 = vunpack.c.h.b16 %v173
    %v560 = vunpack.c.l.b16 %v174
    %v561 = vunpack.c.h.b16 %v174
    %v562 = vunpack.c.l.b16 %v175
    %v563 = vunpack.c.h.b16 %v175
    %v564 = vunpack.c.l.b16 %v176
    %v565 = vunpack.c.h.b16 %v176
    %v566 = vunpack.c.l.b16 %v177
    %v567 = vunpack.c.h.b16 %v177
    %v568 = vunpack.c.l.b16 %v178
    %v569 = vunpack.c.h.b16 %v178
    %v570 = vunpack.c.l.b16 %v179
    %v571 = vunpack.c.h.b16 %v179
    %v572 = vunpack.c.l.b16 %v180
    %v573 = vunpack.c.h.b16 %v180
    %v574 = vunpack.c.l.b16 %v181
    %v575 = vunpack.c.h.b16 %v181
    %v576 = vunpack.c.l.b16 %v182
    %v577 = vunpack.c.h.b16 %v182
    %v578 = vunpack.c.l.b16 %v183
    %v579 = vunpack.c.h.b16 %v183
    %v580 = vunpack.c.l.b16 %v184
    %v581 = vunpack.c.h.b16 %v184
    %v582 = vunpack.c.l.b16 %v185
    %v583 = vunpack.c.h.b16 %v185
    %v584 = vunpack.c.l.b16 %v186
    %v585 = vunpack.c.h.b16 %v186
    %v586 = vunpack.c.l.b16 %v187
    %v587 = vunpack.c.h.b16 %v187
    %v588 = vunpack.c.l.b16 %v188
    %v589 = vunpack.c.h.b16 %v188
    %v590 = vunpack.c.l.b16 %v189
    %v591 = vunpack.c.h.b16 %v189
    %v592 = vunpack.c.l.b16 %v190
    %v593 = vunpack.c.h.b16 %v190
    %v594 = vunpack.c.l.b16 %v191
    %v595 = vunpack.c.h.b16 %v191
    %v596 = vunpack.c.l.b16 %v192
    %v597 = vunpack.c.h.b16 %v192
    %v598 = vunpack.c.l.b16 %v193
    %v599 = vunpack.c.h.b16 %v193
    %v600 = vunpack.c.l.b16 %v194
    %v601 = vunpack.c.h.b16 %v194
    %v602 = vunpack.c.l.b16 %v195
    %v603 = vunpack.c.h.b16 %v195
    %v604 = vunpack.c.l.b16 %v196
    %v605 = vunpack.c.h.b16 %v196
    %v606 = vunpack.c.l.b16 %v197
    %v607 = vunpack.c.h.b16 %v197
    %v608 = vunpack.c.l.b16 %v198
    %v609 = vunpack.c.h.b16 %v198
    %v610 = vunpack.c.l.b16 %v199
    %v611 = vunpack.c.h.b16 %v199
    %v612 = vunpack.c.l.b16 %v200
    %v613 = vunpack.c.h.b16 %v200
    %v614 = vunpack.c.l.b16 %v201
    %v615 = vunpack.c.h.b16 %v201
    %v616 = vunpack.c.l.b16 %v202
    %v617 = vunpack.c.h.b16 %v202
    %v618 = vunpack.c.l.b16 %v203
    %v619 = vunpack.c.h.b16 %v203
    %v620 = vunpack.c.l.b16 %v204
    %v621 = vunpack.c.h.b16 %v204
    %v622 = vunpack.c.l.b16 %v205
    %v623 = vunpack.c.h.b16 %v205
    %v624 = vunpack.c.l.b16 %v206
    %v625 = vunpack.c.h.b16 %v206
    %v626 = vunpack.c.l.b16 %v207
    %v627 = vunpack.c.h.b16 %v207
    %v628 = vunpack.c.l.b16 %v208
    %v629 = vunpack.c.h.b16 %v208
    %v630 = vunpack.c.l.b16 %v209
    %v631 = vunpack.c.h.b16 %v209
    %v632 = vunpack.c.l.b16 %v210
    %v633 = vunpack.c.h.b16 %v210
    %v634 = vunpack.c.l.b16 %v211
    %v635 = vunpack.c.h.b16 %v211
    %v636 = vunpack.c.l.b16 %v212
    %v637 = vunpack.c.h.b16 %v212
    %v638 = vunpack.c.l.b16 %v213
    %v639 = vunpack.c.h.b16 %v213
    %v640 = vunpack.c.l.b16 %v214
    %v641 = vunpack.c.h.b16 %v214
    %v642 = vunpack.c.l.b16 %v215
    %v643 = vunpack.c.h.b16 %v215
    %v644 = vunpack.c.l.b16 %v216
    %v645 = vunpack.c.h.b16 %v216
    %v646 = vunpack.c.l.b16 %v217
    %v647 = vunpack.c.h.b16 %v217
    %v648 = vunpack.c.l.b16 %v218
    %v649 = vunpack.c.h.b16 %v218
    %v650 = vunpack.c.l.b16 %v219
    %v651 = vunpack.c.h.b16 %v219
    %v652 = vunpack.c.l.b16 %v220
    %v653 = vunpack.c.h.b16 %v220
    %v654 = vunpack.c.l.b16 %v221
    %v655 = vunpack.c.h.b16 %v221
    %v656 = vunpack.c.l.b16 %v222
    %v657 = vunpack.c.h.b16 %v222
    %v658 = vunpack.c.l.b16 %v223
    %v659 = vunpack.c.h.b16 %v223
    %v660 = vunpack.c.l.b16 %v224
    %v661 = vunpack.c.h.b16 %v224
    %v662 = vunpack.c.l.b16 %v225
    %v663 = vunpack.c.h.b16 %v225
    %v664 = vunpack.c.l.b16 %v226
    %v665 = vunpack.c.h.b16 %v226
    %v666 = vunpack.c.l.b16 %v227
    %v667 = vunpack.c.h.b16 %v227
    %v668 = vunpack.c.l.b16 %v228
    %v669 = vunpack.c.h.b16 %v228
    %v670 = vunpack.c.l.b16 %v229
    %v671 = vunpack.c.h.b16 %v229
    %v672 = vunpack.c.l.b16 %v230
    %v673 = vunpack.c.h.b16 %v230
    %v674 = vunpack.c.l.b16 %v231
    %v675 = vunpack.c.h.b16 %v231
    %v676 = vunpack.c.l.b16 %v232
    %v677 = vunpack.c.h.b16 %v232
    %v678 = vunpack.c.l.b16 %v233
    %v679 = vunpack.c.h.b16 %v233
    %v680 = vunpack.c.l.b16 %v234
    %v681 = vunpack.c.h.b16 %v234
    %v682 = vunpack.c.l.b16 %v235
    %v683 = vunpack.c.h.b16 %v235
    %v684 = vunpack.c.l.b16 %v236
    %v685 = vunpack.c.h.b16 %v236
    %v686 = vunpack.c.l.b16 %v237
    %v687 = vunpack.c.h.b16 %v237
    %v688 = vunpack.c.l.b16 %v238
    %v689 = vunpack.c.h.b16 %v238
    %v690 = vunpack.c.l.b16 %v239
    %v691 = vunpack.c.h.b16 %v239
    %v692 = vunpack.c.l.b16 %v240
    %v693 = vunpack.c.h.b16 %v240
    %v694 = vunpack.c.l.b16 %v241
    %v695 = vunpack.c.h.b16 %v241
    %v696 = vunpack.c.l.b16 %v242
    %v697 = vunpack.c.h.b16 %v242
    %v698 = vunpack.c.l.b16 %v243
    %v699 = vunpack.c.h.b16 %v243
    %v700 = vunpack.c.l.b16 %v244
    %v701 = vunpack.c.h.b16 %v244
    %v702 = vunpack.c.l.b16 %v245
    %v703 = vunpack.c.h.b16 %v245
    %v704 = vunpack.c.l.b16 %v246
    %v705 = vunpack.c.h.b16 %v246
    %v706 = vunpack.c.l.b16 %v247
    %v707 = vunpack.c.h.b16 %v247
    %v708 = vunpack.c.l.b16 %v248
    %v709 = vunpack.c.h.b16 %v248
    %v710 = vunpack.c.l.b16 %v249
    %v711 = vunpack.c.h.b16 %v249
    %v712 = vunpack.c.l.b16 %v250
    %v713 = vunpack.c.h.b16 %v250
    %v714 = vunpack.c.l.b16 %v251
    %v715 = vunpack.c.h.b16 %v251
    %v716 = vunpack.c.l.b16 %v252
    %v717 = vunpack.c.h.b16 %v252
    %v718 = vunpack.c.l.b16 %v253
    %v719 = vunpack.c.h.b16 %v253
    %v720 = vunpack.c.l.b16 %v254
    %v721 = vunpack.c.h.b16 %v254
    %v722 = vunpack.c.l.b16 %v255
    %v723 = vunpack.c.h.b16 %v255
    %v724 = vunpack.c.l.b16 %v256
    %v725 = vunpack.c.h.b16 %v256
    %v726 = vunpack.c.l.b16 %v257
    %v727 = vunpack.c.h.b16 %v257
    %v728 = vunpack.c.l.b16 %v258
    %v729 = vunpack.c.h.b16 %v258
    %v730 = vunpack.c.l.b16 %v259
    %v731 = vunpack.c.h.b16 %v259
    %v732 = vunpack.c.l.b16 %v260
    %v733 = vunpack.c.h.b16 %v260
    %v734 = vunpack.c.l.b16 %v261
    %v735 = vunpack.c.h.b16 %v261
    %v736 = vunpack.c.l.b16 %v262
    %v737 = vunpack.c.h.b16 %v262
    %v738 = vunpack.c.l.b16 %v263
    %v739 = vunpack.c.h.b16 %v263
    %v740 = vunpack.c.l.b16 %v264
    %v741 = vunpack.c.h.b16 %v264
    %v742 = vunpack.c.l.b16 %v265
    %v743 = vunpack.c.h.b16 %v265
    %v744 = vunpack.c.l.b16 %v266
    %v745 = vunpack.c.h.b16 %v266
    %v746 = vunpack.c.l.b16 %v267
    %v747 = vunpack.c.h.b16 %v267
    %v748 = vunpack.c.l.b16 %v268
    %v749 = vunpack.c.h.b16 %v268
    %v750 = vunpack.c.l.b16 %v269
    %v751 = vunpack.c.h.b16 %v269
    %v752 = vunpack.c.l.b16 %v270
    %v753 = vunpack.c.h.b16 %v270
    %v754 = vunpack.c.l.b16 %v271
    %v755 = vunpack.c.h.b16 %v271
    %v756 = vpack.c.b16 %v504, %v500
    %v757 = vpack.c.b16 %v505, %v501
    %v758 = vpack.c.b16 %v506, %v502
    %v759 = vpack.c.b16 %v507, %v503
    %v760 = vpack.c.b16 %v512, %v508
    %v761 = vpack.c.b16 %v513, %v509
    %v762 = vpack.c.b16 %v514, %v510
    %v763 = vpack.c.b16 %v515, %v511
    %v764 = vpack.c.b16 %v520, %v516
    %v765 = vpack.c.b16 %v521, %v517
    %v766 = vpack.c.b16 %v522, %v518
    %v767 = vpack.c.b16 %v523, %v519
    %v768 = vpack.c.b16 %v528, %v524
    %v769 = vpack.c.b16 %v529, %v525
    %v770 = vpack.c.b16 %v530, %v526
    %v771 = vpack.c.b16 %v531, %v527
    %v772 = vpack.c.b16 %v536, %v532
    %v773 = vpack.c.b16 %v537, %v533
    %v774 = vpack.c.b16 %v538, %v534
    %v775 = vpack.c.b16 %v539, %v535
    %v776 = vpack.c.b16 %v544, %v540
    %v777 = vpack.c.b16 %v545, %v541
    %v778 = vpack.c.b16 %v546, %v542
    %v779 = vpack.c.b16 %v547, %v543
    %v780 = vpack.c.b16 %v552, %v548
    %v781 = vpack.c.b16 %v553, %v549
    %v782 = vpack.c.b16 %v554, %v550
    %v783 = vpack.c.b16 %v555, %v551
    %v784 = vpack.c.b16 %v560, %v556
    %v785 = vpack.c.b16 %v561, %v557
    %v786 = vpack.c.b16 %v562, %v558
    %v787 = vpack.c.b16 %v563, %v559
    %v788 = vpack.c.b16 %v568, %v564
    %v789 = vpack.c.b16 %v569, %v565
    %v790 = vpack.c.b16 %v570, %v566
    %v791 = vpack.c.b16 %v571, %v567
    %v792 = vpack.c.b16 %v576, %v572
    %v793 = vpack.c.b16 %v577, %v573
    %v794 = vpack.c.b16 %v578, %v574
    %v795 = vpack.c.b16 %v579, %v575
    %v796 = vpack.c.b16 %v584, %v580
    %v797 = vpack.c.b16 %v585, %v581
    %v798 = vpack.c.b16 %v586, %v582
    %v799 = vpack.c.b16 %v587, %v583
    %v800 = vpack.c.b16 %v592, %v588
    %v801 = vpack.c.b16 %v593, %v589
    %v802 = vpack.c.b16 %v594, %v590
    %v803 = vpack.c.b16 %v595, %v591
    %v804 = vpack.c.b16 %v600, %v596
    %v805 = vpack.c.b16 %v601, %v597
    %v806 = vpack.c.b16 %v602, %v598
    %v807 = vpack.c.b16 %v603, %v599
    %v808 = vpack.c.b16 %v608, %v604
    %v809 = vpack.c.b16 %v609, %v605
    %v810 = vpack.c.b16 %v610, %v606
    %v811 = vpack.c.b16 %v611, %v607
    %v812 = vpack.c.b16 %v616, %v612
    %v813 = vpack.c.b16 %v617, %v613
    %v814 = vpack.c.b16 %v618, %v614
    %v815 = vpack.c.b16 %v619, %v615
    %v816 = vpack.c.b16 %v624, %v620
    %v817 = vpack.c.b16 %v625, %v621
    %v818 = vpack.c.b16 %v626, %v622
    %v819 = vpack.c.b16 %v627, %v623
    %v820 = vpack.c.b16 %v632, %v628
    %v821 = vpack.c.b16 %v633, %v629
    %v822 = vpack.c.b16 %v634, %v630
    %v823 = vpack.c.b16 %v635, %v631
    %v824 = vpack.c.b16 %v640, %v636
    %v825 = vpack.c.b16 %v641, %v637
    %v826 = vpack.c.b16 %v642, %v638
    %v827 = vpack.c.b16 %v643, %v639
    %v828 = vpack.c.b16 %v648, %v644
    %v829 = vpack.c.b16 %v649, %v645
    %v830 = vpack.c.b16 %v650, %v646
    %v831 = vpack.c.b16 %v651, %v647
    %v832 = vpack.c.b16 %v656, %v652
    %v833 = vpack.c.b16 %v657, %v653
    %v834 = vpack.c.b16 %v658, %v654
    %v835 = vpack.c.b16 %v659, %v655
    %v836 = vpack.c.b16 %v664, %v660
    %v837 = vpack.c.b16 %v665, %v661
    %v838 = vpack.c.b16 %v666, %v662
    %v839 = vpack.c.b16 %v667, %v663
    %v840 = vpack.c.b16 %v672, %v668
    %v841 = vpack.c.b16 %v673, %v669
    %v842 = vpack.c.b16 %v674, %v670
    %v843 = vpack.c.b16 %v675, %v671
    %v844 = vpack.c.b16 %v680, %v676
    %v845 = vpack.c.b16 %v681, %v677
    %v846 = vpack.c.b16 %v682, %v678
    %v847 = vpack.c.b16 %v683, %v679
    %v848 = vpack.c.b16 %v688, %v684
    %v849 = vpack.c.b16 %v689, %v685
    %v850 = vpack.c.b16 %v690, %v686
    %v851 = vpack.c.b16 %v691, %v687
    %v852 = vpack.c.b16 %v696, %v692
    %v853 = vpack.c.b16 %v697, %v693
    %v854 = vpack.c.b16 %v698, %v694
    %v855 = vpack.c.b16 %v699, %v695
    %v856 = vpack.c.b16 %v704, %v700
    %v857 = vpack.c.b16 %v705, %v701
    %v858 = vpack.c.b16 %v706, %v702
    %v859 = vpack.c.b16 %v707, %v703
    %v860 = vpack.c.b16 %v712, %v708
    %v861 = vpack.c.b16 %v713, %v709
    %v862 = vpack.c.b16 %v714, %v710
    %v863 = vpack.c.b16 %v715, %v711
    %v864 = vpack.c.b16 %v720, %v716
    %v865 = vpack.c.b16 %v721, %v717
    %v866 = vpack.c.b16 %v722, %v718
    %v867 = vpack.c.b16 %v723, %v719
    %v868 = vpack.c.b16 %v728, %v724
    %v869 = vpack.c.b16 %v729, %v725
    %v870 = vpack.c.b16 %v730, %v726
    %v871 = vpack.c.b16 %v731, %v727
    %v872 = vpack.c.b16 %v736, %v732
    %v873 = vpack.c.b16 %v737, %v733
    %v874 = vpack.c.b16 %v738, %v734
    %v875 = vpack.c.b16 %v739, %v735
    %v876 = vpack.c.b16 %v744, %v740
    %v877 = vpack.c.b16 %v745, %v741
    %v878 = vpack.c.b16 %v746, %v742
    %v879 = vpack.c.b16 %v747, %v743
    %v880 = vpack.c.b16 %v752, %v748
    %v881 = vpack.c.b16 %v753, %v749
    %v882 = vpack.c.b16 %v754, %v750
    %v883 = vpack.c.b16 %v755, %v751
    %1012 = vmatprep.subr.bf16.mxu0 %v757
    %1013 = vmatpush1.bf16.xpose.msra.mxu0 %v756
    %1014 = vmatprep.subr.bf16.mxu0 %v761
    %1015 = vmatpush1.bf16.xpose.msra.mxu0 %v760
    %1016 = vmatprep.subr.bf16.mxu0 %v765
    %1017 = vmatpush1.bf16.xpose.msra.mxu0 %v764
    %1018 = vmatprep.subr.bf16.mxu0 %v769
    %1019 = vmatpush1.bf16.xpose.msra.mxu0 %v768
    %1020 = vmatprep.subr.bf16.mxu0 %v773
    %1021 = vmatpush1.bf16.xpose.msra.mxu0 %v772
    %1022 = vmatprep.subr.bf16.mxu0 %v777
    %1023 = vmatpush1.bf16.xpose.msra.mxu0 %v776
    %1024 = vmatprep.subr.bf16.mxu0 %v781
    %1025 = vmatpush1.bf16.xpose.msra.mxu0 %v780
    %1026 = vmatprep.subr.bf16.mxu0 %v785
    %1027 = vmatpush1.bf16.xpose.msra.mxu0 %v784
    %1028 = vmatprep.subr.bf16.mxu0 %v789
    %1029 = vmatpush1.bf16.xpose.msra.mxu0 %v788
    %1030 = vmatprep.subr.bf16.mxu0 %v793
    %1031 = vmatpush1.bf16.xpose.msra.mxu0 %v792
    %1032 = vmatprep.subr.bf16.mxu0 %v797
    %1033 = vmatpush1.bf16.xpose.msra.mxu0 %v796
    %1034 = vmatprep.subr.bf16.mxu0 %v801
    %1035 = vmatpush1.bf16.xpose.msra.mxu0 %v800
    %1036 = vmatprep.subr.bf16.mxu0 %v805
    %1037 = vmatpush1.bf16.xpose.msra.mxu0 %v804
    %1038 = vmatprep.subr.bf16.mxu0 %v809
    %1039 = vmatpush1.bf16.xpose.msra.mxu0 %v808
    %1040 = vmatprep.subr.bf16.mxu0 %v813
    %1041 = vmatpush1.bf16.xpose.msra.mxu0 %v812
    %1042 = vmatprep.subr.bf16.mxu0 %v817
    %1043 = vmatpush1.bf16.xpose.msra.mxu0 %v816
    %1044 = vmatprep.mubr.bf16.mxu0 %v333
    %1045 = vmatmul.mubr.bf16.gmra.mrb[0].mxu0 %v332
    %v1046 = vpop.f32.mrb[0].mxu0
    %v1047 = vadd.f32 0.0, %v1046
    %v1048 = vpop.f32.mrb[0].mxu0
    %v1049 = vadd.f32 0.0, %v1048
    %v1050 = vpop.f32.mrb[0].mxu0
    %v1051 = vadd.f32 0.0, %v1050
    %v1052 = vpop.f32.mrb[0].mxu0
    %v1053 = vadd.f32 0.0, %v1052
    %1054 = vmatprep.mubr.bf16.mxu0 %v337
    %1055 = vmatmul.mubr.bf16.gmra.mrb[0].mxu0 %v336
    %v1056 = vpop.f32.mrb[0].mxu0
    %v1057 = vadd.f32 0.0, %v1056
    %v1058 = vpop.f32.mrb[0].mxu0
    %v1059 = vadd.f32 0.0, %v1058
    %v1060 = vpop.f32.mrb[0].mxu0
    %v1061 = vadd.f32 0.0, %v1060
    %v1062 = vpop.f32.mrb[0].mxu0
    %v1063 = vadd.f32 0.0, %v1062
    %1064 = vmatprep.mubr.bf16.mxu0 %v341
    %1065 = vmatmul.mubr.bf16.gmra.mrb[0].mxu0 %v340
    %v1066 = vpop.f32.mrb[0].mxu0
    %v1067 = vadd.f32 0.0, %v1066
    %v1068 = vpop.f32.mrb[0].mxu0
    %v1069 = vadd.f32 0.0, %v1068
    %v1070 = vpop.f32.mrb[0].mxu0
    %v1071 = vadd.f32 0.0, %v1070
    %v1072 = vpop.f32.mrb[0].mxu0
    %v1073 = vadd.f32 0.0, %v1072
    %1074 = vmatprep.mubr.bf16.mxu0 %v345
    %1075 = vmatmul.mubr.bf16.gmra.mrb[0].mxu0 %v344
    %v1076 = vpop.f32.mrb[0].mxu0
    %v1077 = vadd.f32 0.0, %v1076
    %v1078 = vpop.f32.mrb[0].mxu0
    %v1079 = vadd.f32 0.0, %v1078
    %v1080 = vpop.f32.mrb[0].mxu0
    %v1081 = vadd.f32 0.0, %v1080
    %v1082 = vpop.f32.mrb[0].mxu0
    %v1083 = vadd.f32 0.0, %v1082
    %1084 = vmatprep.mubr.bf16.mxu0 %v349
    %1085 = vmatmul.mubr.bf16.gmra.mrb[0].mxu0 %v348
    %v1086 = vpop.f32.mrb[0].mxu0
    %v1087 = vadd.f32 0.0, %v1086
    %v1088 = vpop.f32.mrb[0].mxu0
    %v1089 = vadd.f32 0.0, %v1088
    %v1090 = vpop.f32.mrb[0].mxu0
    %v1091 = vadd.f32 0.0, %v1090
    %v1092 = vpop.f32.mrb[0].mxu0
    %v1093 = vadd.f32 0.0, %v1092
    %1094 = vdwg.mxu0
    %1095 = vmatprep.subr.bf16.mxu0 %v759
    %1096 = vmatpush1.bf16.xpose.msra.mxu0 %v758
    %1097 = vmatprep.subr.bf16.mxu0 %v763
    %1098 = vmatpush1.bf16.xpose.msra.mxu0 %v762
    %1099 = vmatprep.subr.bf16.mxu0 %v767
    %1100 = vmatpush1.bf16.xpose.msra.mxu0 %v766
    %1101 = vmatprep.subr.bf16.mxu0 %v771
    %1102 = vmatpush1.bf16.xpose.msra.mxu0 %v770
    %1103 = vmatprep.subr.bf16.mxu0 %v775
    %1104 = vmatpush1.bf16.xpose.msra.mxu0 %v774
    %1105 = vmatprep.subr.bf16.mxu0 %v779
    %1106 = vmatpush1.bf16.xpose.msra.mxu0 %v778
    %1107 = vmatprep.subr.bf16.mxu0 %v783
    %1108 = vmatpush1.bf16.xpose.msra.mxu0 %v782
    %1109 = vmatprep.subr.bf16.mxu0 %v787
    %1110 = vmatpush1.bf16.xpose.msra.mxu0 %v786
    %1111 = vmatprep.subr.bf16.mxu0 %v791
    %1112 = vmatpush1.bf16.xpose.msra.mxu0 %v790
    %1113 = vmatprep.subr.bf16.mxu0 %v795
    %1114 = vmatpush1.bf16.xpose.msra.mxu0 %v794
    %1115 = vmatprep.subr.bf16.mxu0 %v799
    %1116 = vmatpush1.bf16.xpose.msra.mxu0 %v798
    %1117 = vmatprep.subr.bf16.mxu0 %v803
    %1118 = vmatpush1.bf16.xpose.msra.mxu0 %v802
    %1119 = vmatprep.subr.bf16.mxu0 %v807
    %1120 = vmatpush1.bf16.xpose.msra.mxu0 %v806
    %1121 = vmatprep.subr.bf16.mxu0 %v811
    %1122 = vmatpush1.bf16.xpose.msra.mxu0 %v810
    %1123 = vmatprep.subr.bf16.mxu0 %v815
    %1124 = vmatpush1.bf16.xpose.msra.mxu0 %v814
    %1125 = vmatprep.subr.bf16.mxu0 %v819
    %1126 = vmatpush1.bf16.xpose.msra.mxu0 %v818
    %1127 = vmatprep.mubr.bf16.mxu0 %v335
    %1128 = vmatmul.mubr.bf16.gmra.mrb[0].mxu0 %v334
    %v1129 = vpop.f32.mrb[0].mxu0
    %v1130 = vadd.f32 %v1047, %v1129
    %v1131 = vpop.f32.mrb[0].mxu0
    %v1132 = vadd.f32 %v1049, %v1131
    %v1133 = vpop.f32.mrb[0].mxu0
    %v1134 = vadd.f32 %v1051, %v1133
    %v1135 = vpop.f32.mrb[0].mxu0
    %v1136 = vadd.f32 %v1053, %v1135
    %1137 = vmatprep.mubr.bf16.mxu0 %v339
    %1138 = vmatmul.mubr.bf16.gmra.mrb[0].mxu0 %v338
    %v1139 = vpop.f32.mrb[0].mxu0
    %v1140 = vadd.f32 %v1057, %v1139
    %v1141 = vpop.f32.mrb[0].mxu0
    %v1142 = vadd.f32 %v1059, %v1141
    %v1143 = vpop.f32.mrb[0].mxu0
    %v1144 = vadd.f32 %v1061, %v1143
    %v1145 = vpop.f32.mrb[0].mxu0
    %v1146 = vadd.f32 %v1063, %v1145
    %1147 = vmatprep.mubr.bf16.mxu0 %v343
    %1148 = vmatmul.mubr.bf16.gmra.mrb[0].mxu0 %v342
    %v1149 = vpop.f32.mrb[0].mxu0
    %v1150 = vadd.f32 %v1067, %v1149
    %v1151 = vpop.f32.mrb[0].mxu0
    %v1152 = vadd.f32 %v1069, %v1151
    %v1153 = vpop.f32.mrb[0].mxu0
    %v1154 = vadd.f32 %v1071, %v1153
    %v1155 = vpop.f32.mrb[0].mxu0
    %v1156 = vadd.f32 %v1073, %v1155
    %1157 = vmatprep.mubr.bf16.mxu0 %v347
    %1158 = vmatmul.mubr.bf16.gmra.mrb[0].mxu0 %v346
    %v1159 = vpop.f32.mrb[0].mxu0
    %v1160 = vadd.f32 %v1077, %v1159
    %v1161 = vpop.f32.mrb[0].mxu0
    %v1162 = vadd.f32 %v1079, %v1161
    %v1163 = vpop.f32.mrb[0].mxu0
    %v1164 = vadd.f32 %v1081, %v1163
    %v1165 = vpop.f32.mrb[0].mxu0
    %v1166 = vadd.f32 %v1083, %v1165
    %1167 = vmatprep.mubr.bf16.mxu0 %v351
    %1168 = vmatmul.mubr.bf16.gmra.mrb[0].mxu0 %v350
    %v1169 = vpop.f32.mrb[0].mxu0
    %v1170 = vadd.f32 %v1087, %v1169
    %v1171 = vpop.f32.mrb[0].mxu0
    %v1172 = vadd.f32 %v1089, %v1171
    %v1173 = vpop.f32.mrb[0].mxu0
    %v1174 = vadd.f32 %v1091, %v1173
    %v1175 = vpop.f32.mrb[0].mxu0
    %v1176 = vadd.f32 %v1093, %v1175
    %1177 = vdwg.mxu0
    %1178 = vmatprep.subr.bf16.mxu0 %v821
    %1179 = vmatpush1.bf16.xpose.msra.mxu0 %v820
    %1180 = vmatprep.subr.bf16.mxu0 %v825
    %1181 = vmatpush1.bf16.xpose.msra.mxu0 %v824
    %1182 = vmatprep.subr.bf16.mxu0 %v829
    %1183 = vmatpush1.bf16.xpose.msra.mxu0 %v828
    %1184 = vmatprep.subr.bf16.mxu0 %v833
    %1185 = vmatpush1.bf16.xpose.msra.mxu0 %v832
    %1186 = vmatprep.subr.bf16.mxu0 %v837
    %1187 = vmatpush1.bf16.xpose.msra.mxu0 %v836
    %1188 = vmatprep.subr.bf16.mxu0 %v841
    %1189 = vmatpush1.bf16.xpose.msra.mxu0 %v840
    %1190 = vmatprep.subr.bf16.mxu0 %v845
    %1191 = vmatpush1.bf16.xpose.msra.mxu0 %v844
    %1192 = vmatprep.subr.bf16.mxu0 %v849
    %1193 = vmatpush1.bf16.xpose.msra.mxu0 %v848
    %1194 = vmatprep.subr.bf16.mxu0 %v853
    %1195 = vmatpush1.bf16.xpose.msra.mxu0 %v852
    %1196 = vmatprep.subr.bf16.mxu0 %v857
    %1197 = vmatpush1.bf16.xpose.msra.mxu0 %v856
    %1198 = vmatprep.subr.bf16.mxu0 %v861
    %1199 = vmatpush1.bf16.xpose.msra.mxu0 %v860
    %1200 = vmatprep.subr.bf16.mxu0 %v865
    %1201 = vmatpush1.bf16.xpose.msra.mxu0 %v864
    %1202 = vmatprep.subr.bf16.mxu0 %v869
    %1203 = vmatpush1.bf16.xpose.msra.mxu0 %v868
    %1204 = vmatprep.subr.bf16.mxu0 %v873
    %1205 = vmatpush1.bf16.xpose.msra.mxu0 %v872
    %1206 = vmatprep.subr.bf16.mxu0 %v877
    %1207 = vmatpush1.bf16.xpose.msra.mxu0 %v876
    %1208 = vmatprep.subr.bf16.mxu0 %v881
    %1209 = vmatpush1.bf16.xpose.msra.mxu0 %v880
    %1210 = vmatprep.mubr.bf16.mxu0 %v333
    %1211 = vmatmul.mubr.bf16.gmra.mrb[0].mxu0 %v332
    %v1212 = vpop.f32.mrb[0].mxu0
    %v1213 = vadd.f32 0.0, %v1212
    %v1214 = vpop.f32.mrb[0].mxu0
    %v1215 = vadd.f32 0.0, %v1214
    %v1216 = vpop.f32.mrb[0].mxu0
    %v1217 = vadd.f32 0.0, %v1216
    %v1218 = vpop.f32.mrb[0].mxu0
    %v1219 = vadd.f32 0.0, %v1218
    %1220 = vmatprep.mubr.bf16.mxu0 %v337
    %1221 = vmatmul.mubr.bf16.gmra.mrb[0].mxu0 %v336
    %v1222 = vpop.f32.mrb[0].mxu0
    %v1223 = vadd.f32 0.0, %v1222
    %v1224 = vpop.f32.mrb[0].mxu0
    %v1225 = vadd.f32 0.0, %v1224
    %v1226 = vpop.f32.mrb[0].mxu0
    %v1227 = vadd.f32 0.0, %v1226
    %v1228 = vpop.f32.mrb[0].mxu0
    %v1229 = vadd.f32 0.0, %v1228
    %1230 = vmatprep.mubr.bf16.mxu0 %v341
    %1231 = vmatmul.mubr.bf16.gmra.mrb[0].mxu0 %v340
    %v1232 = vpop.f32.mrb[0].mxu0
    %v1233 = vadd.f32 0.0, %v1232
    %v1234 = vpop.f32.mrb[0].mxu0
    %v1235 = vadd.f32 0.0, %v1234
    %v1236 = vpop.f32.mrb[0].mxu0
    %v1237 = vadd.f32 0.0, %v1236
    %v1238 = vpop.f32.mrb[0].mxu0
    %v1239 = vadd.f32 0.0, %v1238
    %1240 = vmatprep.mubr.bf16.mxu0 %v345
    %1241 = vmatmul.mubr.bf16.gmra.mrb[0].mxu0 %v344
    %v1242 = vpop.f32.mrb[0].mxu0
    %v1243 = vadd.f32 0.0, %v1242
    %v1244 = vpop.f32.mrb[0].mxu0
    %v1245 = vadd.f32 0.0, %v1244
    %v1246 = vpop.f32.mrb[0].mxu0
    %v1247 = vadd.f32 0.0, %v1246
    %v1248 = vpop.f32.mrb[0].mxu0
    %v1249 = vadd.f32 0.0, %v1248
    %1250 = vmatprep.mubr.bf16.mxu0 %v349
    %1251 = vmatmul.mubr.bf16.gmra.mrb[0].mxu0 %v348
    %v1252 = vpop.f32.mrb[0].mxu0
    %v1253 = vadd.f32 0.0, %v1252
    %v1254 = vpop.f32.mrb[0].mxu0
    %v1255 = vadd.f32 0.0, %v1254
    %v1256 = vpop.f32.mrb[0].mxu0
    %v1257 = vadd.f32 0.0, %v1256
    %v1258 = vpop.f32.mrb[0].mxu0
    %v1259 = vadd.f32 0.0, %v1258
    %1260 = vdwg.mxu0
    %1261 = vmatprep.subr.bf16.mxu0 %v823
    %1262 = vmatpush1.bf16.xpose.msra.mxu0 %v822
    %1263 = vmatprep.subr.bf16.mxu0 %v827
    %1264 = vmatpush1.bf16.xpose.msra.mxu0 %v826
    %1265 = vmatprep.subr.bf16.mxu0 %v831
    %1266 = vmatpush1.bf16.xpose.msra.mxu0 %v830
    %1267 = vmatprep.subr.bf16.mxu0 %v835
    %1268 = vmatpush1.bf16.xpose.msra.mxu0 %v834
    %1269 = vmatprep.subr.bf16.mxu0 %v839
    %1270 = vmatpush1.bf16.xpose.msra.mxu0 %v838
    %1271 = vmatprep.subr.bf16.mxu0 %v843
    %1272 = vmatpush1.bf16.xpose.msra.mxu0 %v842
    %1273 = vmatprep.subr.bf16.mxu0 %v847
    %1274 = vmatpush1.bf16.xpose.msra.mxu0 %v846
    %1275 = vmatprep.subr.bf16.mxu0 %v851
    %1276 = vmatpush1.bf16.xpose.msra.mxu0 %v850
    %1277 = vmatprep.subr.bf16.mxu0 %v855
    %1278 = vmatpush1.bf16.xpose.msra.mxu0 %v854
    %1279 = vmatprep.subr.bf16.mxu0 %v859
    %1280 = vmatpush1.bf16.xpose.msra.mxu0 %v858
    %1281 = vmatprep.subr.bf16.mxu0 %v863
    %1282 = vmatpush1.bf16.xpose.msra.mxu0 %v862
    %1283 = vmatprep.subr.bf16.mxu0 %v867
    %1284 = vmatpush1.bf16.xpose.msra.mxu0 %v866
    %1285 = vmatprep.subr.bf16.mxu0 %v871
    %1286 = vmatpush1.bf16.xpose.msra.mxu0 %v870
    %1287 = vmatprep.subr.bf16.mxu0 %v875
    %1288 = vmatpush1.bf16.xpose.msra.mxu0 %v874
    %1289 = vmatprep.subr.bf16.mxu0 %v879
    %1290 = vmatpush1.bf16.xpose.msra.mxu0 %v878
    %1291 = vmatprep.subr.bf16.mxu0 %v883
    %1292 = vmatpush1.bf16.xpose.msra.mxu0 %v882
    %1293 = vmatprep.mubr.bf16.mxu0 %v335
    %1294 = vmatmul.mubr.bf16.gmra.mrb[0].mxu0 %v334
    %v1295 = vpop.f32.mrb[0].mxu0
    %v1296 = vadd.f32 %v1213, %v1295
    %v1297 = vpop.f32.mrb[0].mxu0
    %v1298 = vadd.f32 %v1215, %v1297
    %v1299 = vpop.f32.mrb[0].mxu0
    %v1300 = vadd.f32 %v1217, %v1299
    %v1301 = vpop.f32.mrb[0].mxu0
    %v1302 = vadd.f32 %v1219, %v1301
    %1303 = vmatprep.mubr.bf16.mxu0 %v339
    %1304 = vmatmul.mubr.bf16.gmra.mrb[0].mxu0 %v338
    %v1305 = vpop.f32.mrb[0].mxu0
    %v1306 = vadd.f32 %v1223, %v1305
    %v1307 = vpop.f32.mrb[0].mxu0
    %v1308 = vadd.f32 %v1225, %v1307
    %v1309 = vpop.f32.mrb[0].mxu0
    %v1310 = vadd.f32 %v1227, %v1309
    %v1311 = vpop.f32.mrb[0].mxu0
    %v1312 = vadd.f32 %v1229, %v1311
    %1313 = vmatprep.mubr.bf16.mxu0 %v343
    %1314 = vmatmul.mubr.bf16.gmra.mrb[0].mxu0 %v342
    %v1315 = vpop.f32.mrb[0].mxu0
    %v1316 = vadd.f32 %v1233, %v1315
    %v1317 = vpop.f32.mrb[0].mxu0
    %v1318 = vadd.f32 %v1235, %v1317
    %v1319 = vpop.f32.mrb[0].mxu0
    %v1320 = vadd.f32 %v1237, %v1319
    %v1321 = vpop.f32.mrb[0].mxu0
    %v1322 = vadd.f32 %v1239, %v1321
    %1323 = vmatprep.mubr.bf16.mxu0 %v347
    %1324 = vmatmul.mubr.bf16.gmra.mrb[0].mxu0 %v346
    %v1325 = vpop.f32.mrb[0].mxu0
    %v1326 = vadd.f32 %v1243, %v1325
    %v1327 = vpop.f32.mrb[0].mxu0
    %v1328 = vadd.f32 %v1245, %v1327
    %v1329 = vpop.f32.mrb[0].mxu0
    %v1330 = vadd.f32 %v1247, %v1329
    %v1331 = vpop.f32.mrb[0].mxu0
    %v1332 = vadd.f32 %v1249, %v1331
    %1333 = vmatprep.mubr.bf16.mxu0 %v351
    %1334 = vmatmul.mubr.bf16.gmra.mrb[0].mxu0 %v350
    %v1335 = vpop.f32.mrb[0].mxu0
    %v1336 = vadd.f32 %v1253, %v1335
    %v1337 = vpop.f32.mrb[0].mxu0
    %v1338 = vadd.f32 %v1255, %v1337
    %v1339 = vpop.f32.mrb[0].mxu0
    %v1340 = vadd.f32 %v1257, %v1339
    %v1341 = vpop.f32.mrb[0].mxu0
    %v1342 = vadd.f32 %v1259, %v1341
    %1343 = vdwg.mxu0
    %v1344 = vadd.f32 %v84, %v1130
    %v1345 = vadd.f32 %v85, %v1132
    %v1346 = vadd.f32 %v86, %v1296
    %v1347 = vadd.f32 %v87, %v1298
    %v1348 = vadd.f32 %v88, %v1134
    %v1349 = vadd.f32 %v89, %v1136
    %v1350 = vadd.f32 %v90, %v1300
    %v1351 = vadd.f32 %v91, %v1302
    %v1352 = vadd.f32 %v92, %v1140
    %v1353 = vadd.f32 %v93, %v1142
    %v1354 = vadd.f32 %v94, %v1306
    %v1355 = vadd.f32 %v95, %v1308
    %v1356 = vadd.f32 %v96, %v1144
    %v1357 = vadd.f32 %v97, %v1146
    %v1358 = vadd.f32 %v98, %v1310
    %v1359 = vadd.f32 %v99, %v1312
    %v1360 = vadd.f32 %v100, %v1150
    %v1361 = vadd.f32 %v101, %v1152
    %v1362 = vadd.f32 %v102, %v1316
    %v1363 = vadd.f32 %v103, %v1318
    %v1364 = vadd.f32 %v104, %v1154
    %v1365 = vadd.f32 %v105, %v1156
    %v1366 = vadd.f32 %v106, %v1320
    %v1367 = vadd.f32 %v107, %v1322
    %v1368 = vadd.f32 %v108, %v1160
    %v1369 = vadd.f32 %v109, %v1162
    %v1370 = vadd.f32 %v110, %v1326
    %v1371 = vadd.f32 %v111, %v1328
    %v1372 = vadd.f32 %v112, %v1164
    %v1373 = vadd.f32 %v113, %v1166
    %v1374 = vadd.f32 %v114, %v1330
    %v1375 = vadd.f32 %v115, %v1332
    %v1376 = vadd.f32 %v116, %v1170
    %v1377 = vadd.f32 %v117, %v1172
    %v1378 = vadd.f32 %v118, %v1336
    %v1379 = vadd.f32 %v119, %v1338
    %v1380 = vadd.f32 %v120, %v1174
    %v1381 = vadd.f32 %v121, %v1176
    %v1382 = vadd.f32 %v122, %v1340
    %v1383 = vadd.f32 %v123, %v1342
    %1384 = vst [vmem:[#allocation2] sm:$0xff] %v1344
    %1385 = vst [vmem:[#allocation2 + $0x8] sm:$0xff] %v1345
    %1386 = vst [vmem:[#allocation2 + $0x10] sm:$0xff] %v1346
    %1387 = vst [vmem:[#allocation2 + $0x18] sm:$0xff] %v1347
    %1388 = vst [vmem:[#allocation2 + $0x20] sm:$0xff] %v1348
    %1389 = vst [vmem:[#allocation2 + $0x28] sm:$0xff] %v1349
    %1390 = vst [vmem:[#allocation2 + $0x30] sm:$0xff] %v1350
    %1391 = vst [vmem:[#allocation2 + $0x38] sm:$0xff] %v1351
    %1392 = vst [vmem:[#allocation2 + $0x40] sm:$0xff] %v1352
    %1393 = vst [vmem:[#allocation2 + $0x48] sm:$0xff] %v1353
    %1394 = vst [vmem:[#allocation2 + $0x50] sm:$0xff] %v1354
    %1395 = vst [vmem:[#allocation2 + $0x58] sm:$0xff] %v1355
    %1396 = vst [vmem:[#allocation2 + $0x60] sm:$0xff] %v1356
    %1397 = vst [vmem:[#allocation2 + $0x68] sm:$0xff] %v1357
    %1398 = vst [vmem:[#allocation2 + $0x70] sm:$0xff] %v1358
    %1399 = vst [vmem:[#allocation2 + $0x78] sm:$0xff] %v1359
    %1400 = vst [vmem:[#allocation2 + $0x80] sm:$0xff] %v1360
    %1401 = vst [vmem:[#allocation2 + $0x88] sm:$0xff] %v1361
    %1402 = vst [vmem:[#allocation2 + $0x90] sm:$0xff] %v1362
    %1403 = vst [vmem:[#allocation2 + $0x98] sm:$0xff] %v1363
    %1404 = vst [vmem:[#allocation2 + $0xa0] sm:$0xff] %v1364
    %1405 = vst [vmem:[#allocation2 + $0xa8] sm:$0xff] %v1365
    %1406 = vst [vmem:[#allocation2 + $0xb0] sm:$0xff] %v1366
    %1407 = vst [vmem:[#allocation2 + $0xb8] sm:$0xff] %v1367
    %1408 = vst [vmem:[#allocation2 + $0xc0] sm:$0xff] %v1368
    %1409 = vst [vmem:[#allocation2 + $0xc8] sm:$0xff] %v1369
    %1410 = vst [vmem:[#allocation2 + $0xd0] sm:$0xff] %v1370
    %1411 = vst [vmem:[#allocation2 + $0xd8] sm:$0xff] %v1371
    %1412 = vst [vmem:[#allocation2 + $0xe0] sm:$0xff] %v1372
    %1413 = vst [vmem:[#allocation2 + $0xe8] sm:$0xff] %v1373
    %1414 = vst [vmem:[#allocation2 + $0xf0] sm:$0xff] %v1374
    %1415 = vst [vmem:[#allocation2 + $0xf8] sm:$0xff] %v1375
    %1416 = vst [vmem:[#allocation2 + $0x100] sm:$0xff] %v1376
    %1417 = vst [vmem:[#allocation2 + $0x108] sm:$0xff] %v1377
    %1418 = vst [vmem:[#allocation2 + $0x110] sm:$0xff] %v1378
    %1419 = vst [vmem:[#allocation2 + $0x118] sm:$0xff] %v1379
    %1420 = vst [vmem:[#allocation2 + $0x120] sm:$0xff] %v1380
    %1421 = vst [vmem:[#allocation2 + $0x128] sm:$0xff] %v1381
    %1422 = vst [vmem:[#allocation2 + $0x130] sm:$0xff] %v1382
    %1423 = vst [vmem:[#allocation2 + $0x138] sm:$0xff] %v1383
    // Predicated region
    $region22: #{tpu_custom_call.1} parent=1 // pred_check
      %p1424 = pneg %p40
    $region23: #{tpu_custom_call.1} parent=1 // pred_check_branch
      %1426 = sbr.rel (%p1424) target = $region25
    $region24: #{tpu_custom_call.1} parent=1 // pred_region
      %v1427 = vld [vmem:[#allocation2] sm:$0xff]
      %v1428 = vld [vmem:[#allocation2 + $0x8] sm:$0xff]
      %v1429 = vld [vmem:[#allocation2 + $0x10] sm:$0xff]
      %v1430 = vld [vmem:[#allocation2 + $0x18] sm:$0xff]
      %v1431 = vld [vmem:[#allocation2 + $0x20] sm:$0xff]
      %v1432 = vld [vmem:[#allocation2 + $0x28] sm:$0xff]
      %v1433 = vld [vmem:[#allocation2 + $0x30] sm:$0xff]
      %v1434 = vld [vmem:[#allocation2 + $0x38] sm:$0xff]
      %v1435 = vld [vmem:[#allocation2 + $0x40] sm:$0xff]
      %v1436 = vld [vmem:[#allocation2 + $0x48] sm:$0xff]
      %v1437 = vld [vmem:[#allocation2 + $0x50] sm:$0xff]
      %v1438 = vld [vmem:[#allocation2 + $0x58] sm:$0xff]
      %v1439 = vld [vmem:[#allocation2 + $0x60] sm:$0xff]
      %v1440 = vld [vmem:[#allocation2 + $0x68] sm:$0xff]
      %v1441 = vld [vmem:[#allocation2 + $0x70] sm:$0xff]
      %v1442 = vld [vmem:[#allocation2 + $0x78] sm:$0xff]
      %v1443 = vld [vmem:[#allocation2 + $0x80] sm:$0xff]
      %v1444 = vld [vmem:[#allocation2 + $0x88] sm:$0xff]
      %v1445 = vld [vmem:[#allocation2 + $0x90] sm:$0xff]
      %v1446 = vld [vmem:[#allocation2 + $0x98] sm:$0xff]
      %v1447 = vld [vmem:[#allocation2 + $0xa0] sm:$0xff]
      %v1448 = vld [vmem:[#allocation2 + $0xa8] sm:$0xff]
      %v1449 = vld [vmem:[#allocation2 + $0xb0] sm:$0xff]
      %v1450 = vld [vmem:[#allocation2 + $0xb8] sm:$0xff]
      %v1451 = vld [vmem:[#allocation2 + $0xc0] sm:$0xff]
      %v1452 = vld [vmem:[#allocation2 + $0xc8] sm:$0xff]
      %v1453 = vld [vmem:[#allocation2 + $0xd0] sm:$0xff]
      %v1454 = vld [vmem:[#allocation2 + $0xd8] sm:$0xff]
      %v1455 = vld [vmem:[#allocation2 + $0xe0] sm:$0xff]
      %v1456 = vld [vmem:[#allocation2 + $0xe8] sm:$0xff]
      %v1457 = vld [vmem:[#allocation2 + $0xf0] sm:$0xff]
      %v1458 = vld [vmem:[#allocation2 + $0xf8] sm:$0xff]
      %v1459 = vld [vmem:[#allocation2 + $0x100] sm:$0xff]
      %v1460 = vld [vmem:[#allocation2 + $0x108] sm:$0xff]
      %v1461 = vld [vmem:[#allocation2 + $0x110] sm:$0xff]
      %v1462 = vld [vmem:[#allocation2 + $0x118] sm:$0xff]
      %v1463 = vld [vmem:[#allocation2 + $0x120] sm:$0xff]
      %v1464 = vld [vmem:[#allocation2 + $0x128] sm:$0xff]
      %v1465 = vld [vmem:[#allocation2 + $0x130] sm:$0xff]
      %v1466 = vld [vmem:[#allocation2 + $0x138] sm:$0xff]
      %v1467 = vpack.c.bf16 %v1431, %v1427
      %v1468 = vpack.c.bf16 %v1432, %v1428
      %v1469 = vpack.c.bf16 %v1433, %v1429
      %v1470 = vpack.c.bf16 %v1434, %v1430
      %v1471 = vpack.c.bf16 %v1439, %v1435
      %v1472 = vpack.c.bf16 %v1440, %v1436
      %v1473 = vpack.c.bf16 %v1441, %v1437
      %v1474 = vpack.c.bf16 %v1442, %v1438
      %v1475 = vpack.c.bf16 %v1447, %v1443
      %v1476 = vpack.c.bf16 %v1448, %v1444
      %v1477 = vpack.c.bf16 %v1449, %v1445
      %v1478 = vpack.c.bf16 %v1450, %v1446
      %v1479 = vpack.c.bf16 %v1455, %v1451
      %v1480 = vpack.c.bf16 %v1456, %v1452
      %v1481 = vpack.c.bf16 %v1457, %v1453
      %v1482 = vpack.c.bf16 %v1458, %v1454
      %v1483 = vpack.c.bf16 %v1463, %v1459
      %v1484 = vpack.c.bf16 %v1464, %v1460
      %v1485 = vpack.c.bf16 %v1465, %v1461
      %v1486 = vpack.c.bf16 %v1466, %v1462
      %v1507 = vunpack.c.l.b16 %v1467
      %v1508 = vunpack.c.l.b16 %v1468
      %v1509 = vunpack.c.l.b16 %v1469
      %v1510 = vunpack.c.l.b16 %v1470
      %v1511 = vunpack.c.h.b16 %v1467
      %v1512 = vunpack.c.h.b16 %v1468
      %v1513 = vunpack.c.h.b16 %v1469
      %v1514 = vunpack.c.h.b16 %v1470
      %v1515 = vunpack.c.l.b16 %v1471
      %v1516 = vunpack.c.l.b16 %v1472
      %v1517 = vunpack.c.l.b16 %v1473
      %v1518 = vunpack.c.l.b16 %v1474
      %v1519 = vunpack.c.h.b16 %v1471
      %v1520 = vunpack.c.h.b16 %v1472
      %v1521 = vunpack.c.h.b16 %v1473
      %v1522 = vunpack.c.h.b16 %v1474
      %v1523 = vunpack.c.l.b16 %v1475
      %v1524 = vunpack.c.l.b16 %v1476
      %v1525 = vunpack.c.l.b16 %v1477
      %v1526 = vunpack.c.l.b16 %v1478
      %v1527 = vunpack.c.h.b16 %v1475
      %v1528 = vunpack.c.h.b16 %v1476
      %v1529 = vunpack.c.h.b16 %v1477
      %v1530 = vunpack.c.h.b16 %v1478
      %v1531 = vunpack.c.l.b16 %v1479
      %v1532 = vunpack.c.l.b16 %v1480
      %v1533 = vunpack.c.l.b16 %v1481
      %v1534 = vunpack.c.l.b16 %v1482
      %v1535 = vunpack.c.h.b16 %v1479
      %v1536 = vunpack.c.h.b16 %v1480
      %v1537 = vunpack.c.h.b16 %v1481
      %v1538 = vunpack.c.h.b16 %v1482
      %v1539 = vunpack.c.l.b16 %v1483
      %v1540 = vunpack.c.l.b16 %v1484
      %v1541 = vunpack.c.l.b16 %v1485
      %v1542 = vunpack.c.l.b16 %v1486
      %v1543 = vunpack.c.h.b16 %v1483
      %v1544 = vunpack.c.h.b16 %v1484
      %v1545 = vunpack.c.h.b16 %v1485
      %v1546 = vunpack.c.h.b16 %v1486
      %v1547 = vpack.c.b16 %v1508, %v1507
      %v1548 = vpack.c.b16 %v1510, %v1509
      %v1549 = vpack.c.b16 %v1512, %v1511
      %v1550 = vpack.c.b16 %v1514, %v1513
      %v1551 = vpack.c.b16 %v1516, %v1515
      %v1552 = vpack.c.b16 %v1518, %v1517
      %v1553 = vpack.c.b16 %v1520, %v1519
      %v1554 = vpack.c.b16 %v1522, %v1521
      %v1555 = vpack.c.b16 %v1524, %v1523
      %v1556 = vpack.c.b16 %v1526, %v1525
      %v1557 = vpack.c.b16 %v1528, %v1527
      %v1558 = vpack.c.b16 %v1530, %v1529
      %v1559 = vpack.c.b16 %v1532, %v1531
      %v1560 = vpack.c.b16 %v1534, %v1533
      %v1561 = vpack.c.b16 %v1536, %v1535
      %v1562 = vpack.c.b16 %v1538, %v1537
      %v1563 = vpack.c.b16 %v1540, %v1539
      %v1564 = vpack.c.b16 %v1542, %v1541
      %v1565 = vpack.c.b16 %v1544, %v1543
      %v1566 = vpack.c.b16 %v1546, %v1545
      %1587 = vst [vmem:[#allocation8] sm:$0xff] %v1547
      %1588 = vst [vmem:[#allocation8 + $0x8] sm:$0xff] %v1548
      %1589 = vst [vmem:[#allocation8 + $0x10] sm:$0xff] %v1549
      %1590 = vst [vmem:[#allocation8 + $0x18] sm:$0xff] %v1550
      %1591 = vst [vmem:[#allocation8 + $0x20] sm:$0xff] %v1551
      %1592 = vst [vmem:[#allocation8 + $0x28] sm:$0xff] %v1552
      %1593 = vst [vmem:[#allocation8 + $0x30] sm:$0xff] %v1553
      %1594 = vst [vmem:[#allocation8 + $0x38] sm:$0xff] %v1554
      %1595 = vst [vmem:[#allocation8 + $0x40] sm:$0xff] %v1555
      %1596 = vst [vmem:[#allocation8 + $0x48] sm:$0xff] %v1556
      %1597 = vst [vmem:[#allocation8 + $0x50] sm:$0xff] %v1557
      %1598 = vst [vmem:[#allocation8 + $0x58] sm:$0xff] %v1558
      %1599 = vst [vmem:[#allocation8 + $0x60] sm:$0xff] %v1559
      %1600 = vst [vmem:[#allocation8 + $0x68] sm:$0xff] %v1560
      %1601 = vst [vmem:[#allocation8 + $0x70] sm:$0xff] %v1561
      %1602 = vst [vmem:[#allocation8 + $0x78] sm:$0xff] %v1562
      %1603 = vst [vmem:[#allocation8 + $0x80] sm:$0xff] %v1563
      %1604 = vst [vmem:[#allocation8 + $0x88] sm:$0xff] %v1564
      %1605 = vst [vmem:[#allocation8 + $0x90] sm:$0xff] %v1565
      %1606 = vst [vmem:[#allocation8 + $0x98] sm:$0xff] %v1566
    $region25: #{tpu_custom_call.1} parent=1 // pred_fallthru
      _
    // Predicated region
    $region26: #{tpu_custom_call.1} parent=1 // pred_check
      _
    $region27: #{tpu_custom_call.1} parent=1 // pred_check_branch
      %1608 = sbr.rel (0) target = $region29
    $region28: #{tpu_custom_call.1} parent=1 // pred_region
      %s1610 = ssub.s32 2560, 2560
      %1611 = vsyncadd [#allocation5], %s1610
      %s1612 = sshll.u32 [#allocation8], 4
      %s1613 = int_to_ptr.vmem [resolvable:$true] %s1612
      %1618 = dma.vmem_to_hbm [thread:$0]  %s1613, 2560, %s2, [#allocation5], 256, 256, 16
    $region29: #{tpu_custom_call.1} parent=1 // pred_fallthru
      _
    // Predicated region
    $region30: #{tpu_custom_call.1} parent=1 // pred_check
      _
    $region31: #{tpu_custom_call.1} parent=1 // pred_check_branch
      %1620 = sbr.rel (0) target = $region33
    $region32: #{tpu_custom_call.1} parent=1 // pred_region
      %1621 = dma.done [#allocation5], 2560
    $region33: #{tpu_custom_call.1} parent=1 // pred_fallthru
      _
    %1622 = vsyncpa [#allocation4], 1
    %1623 = vsyncpa [#allocation7], 1
    %1624 = vsyncpa [#allocation5], 1

</llo_original>
